<compile_context>
chip_gen: v7x
topology: tpu7x:2x2x1
jax: 0.10.0
libtpu: 0.0.40
codegen_flags: <defaults>
</compile_context>

<pallas_src>
import functools
import numpy as np

import jax
import jax.numpy as jnp
from jax.experimental import pallas as pl
from jax.experimental.pallas import tpu as pltpu


# Set to jnp.bfloat16 on v6e/v7x to halve MXU cadence + weight DMA bytes
# (perf review). Kept f32 here for exact parity with the PyTorch reference;
# all LayerNorm / residual math is f32 regardless.
_MXU_DTYPE = jnp.float32


# ----------------------------- config --------------------------------------

class Cfg:
    input_dim = 1
    steps_per_day = 48
    tod_embedding_dim = 8
    dow_embedding_dim = 8
    num_nodes = 4
    dsp = 8
    dsu = 8
    in_steps = 8
    out_steps = 4


# ----------------------------- fused kernel --------------------------------

def _make_kernel(cfg):
    T = cfg.in_steps
    dt = cfg.tod_embedding_dim + cfg.dow_embedding_dim   # 16
    ds = cfg.dsp + cfg.dsu                                # 16
    dst = dt + ds                                         # 32
    dtot = dst + 96                                       # 128
    in_dim = cfg.input_dim

    def _row_block(h, w, p, d):
        """BasicBlock on the last (lane) axis. h:[R,d] w:[d,d] p:[3,d]."""
        y = jnp.dot(h.astype(_MXU_DTYPE), w.astype(_MXU_DTYPE),
                    preferred_element_type=jnp.float32) + p[0:1, :]
        inv = 1.0 / float(d)
        s1 = jnp.sum(y, axis=-1, keepdims=True) * inv
        s2 = jnp.sum(y * y, axis=-1, keepdims=True) * inv
        y = (y - s1) * jax.lax.rsqrt((s2 - s1 * s1) + 1e-5)
        y = y * p[1:2, :] + p[2:3, :]
        return jnp.maximum(y, 0.0) + h                    # dropout = identity

    def _time_block(h, w, p):
        """BasicBlock on the sublane (time) axis. h:[T,D] w:[T,T] p:[3,T,1]."""
        y = jnp.dot(w.astype(_MXU_DTYPE), h.astype(_MXU_DTYPE),
                    preferred_element_type=jnp.float32) + p[0]
        inv = 1.0 / float(T)
        s1 = jnp.sum(y, axis=0, keepdims=True) * inv
        s2 = jnp.sum(y * y, axis=0, keepdims=True) * inv
        y = (y - s1) * jax.lax.rsqrt((s2 - s1 * s1) + 1e-5)
        y = y * p[1] + p[2]
        return jnp.maximum(y, 0.0) + h

    def kernel(tem_ref, spa_ref, data_ref,
               wa_ref, pa_ref, wb_ref, pb_ref, wdm_ref, pdm_ref,
               dew_ref, deb_ref, dl_ref, wc_ref, pc_ref,
               we_ref, pe_ref, wf_ref, pf_ref,
               ws_ref, sb_ref, ow_ref, ob_ref,
               out_ref):
        tem = tem_ref[0, 0]                               # [T, dt]
        spa0 = spa_ref[0, 0]                              # [1, ds]
        data = data_ref[0, 0]                             # [T, in_dim]

        # --- MLPA on temporal embedding -----------------------------------
        tem = _row_block(tem, wa_ref[0], pa_ref[0], dt)

        # --- spatial embedding: broadcast over T in-kernel, then MLPB ------
        spa = jnp.broadcast_to(spa0, (T, ds))
        spa = _row_block(spa, wb_ref[0], pb_ref[0], ds)

        # --- MLPD on concat(spa, tem) --------------------------------------
        st = jnp.concatenate([spa, tem], axis=-1)          # [T, dst]
        st = _row_block(st, wdm_ref[0], pdm_ref[0], dst)

        # --- data embedding (Linear in_dim -> 96) as VPU broadcast-FMA -----
        dew = dew_ref[...]                                 # [in_dim, 96]
        xe = data[:, 0:1] * dew[0:1, :]
        for k in range(1, in_dim):
            xe = xe + data[:, k:k + 1] * dew[k:k + 1, :]
        xe = xe + deb_ref[...]                             # [1, 96]
        xe = _row_block(xe, wc_ref[0], pc_ref[0], 96)      # MLPC
        xe = xe + dl_ref[...]                              # + data_l

        # --- MLPE (3 blocks) on concat(st, xe) -----------------------------
        step = jnp.concatenate([st, xe], axis=-1)          # [T, dtot]
        for i in range(we_ref.shape[0]):
            step = _row_block(step, we_ref[i], pe_ref[i], dtot)

        # --- MLPF: time mixing with D lane-dense (replaces the permutes) ---
        for i in range(wf_ref.shape[0]):
            step = _time_block(step, wf_ref[i], pf_ref[i])

        # --- steps_linear: T -> out_steps ----------------------------------
        so = jnp.dot(ws_ref[...].astype(_MXU_DTYPE), step.astype(_MXU_DTYPE),
                     preferred_element_type=jnp.float32) + sb_ref[...]  # [S, dtot]

        # --- out_linear (dtot -> 1) fused as a lane reduction --------------
        res = jnp.sum(so * ow_ref[...], axis=-1, keepdims=True) + ob_ref[...]
        out_ref[0, 0] = res                                # [S, 1]

    return kernel


def _fused_call(params, tem_in, spa_in, data_in, cfg):
    B, N = tem_in.shape[0], tem_in.shape[1]
    T, S = cfg.in_steps, cfg.out_steps
    dt = cfg.tod_embedding_dim + cfg.dow_embedding_dim
    ds = cfg.dsp + cfg.dsu
    in_dim = cfg.input_dim

    weights = [
        params["MLPA"]["W"], params["MLPA"]["P"],
        params["MLPB"]["W"], params["MLPB"]["P"],
        params["MLPD"]["W"], params["MLPD"]["P"],
        params["data_W"], params["data_b"], params["data_l"],
        params["MLPC"]["W"], params["MLPC"]["P"],
        params["MLPE"]["W"], params["MLPE"]["P"],
        params["MLPF"]["W"], params["MLPF"]["P"],
        params["steps_W"], params["steps_b"],
        params["out_W"], params["out_b"],
    ]

    tile_map = lambda b, n: (b, n, 0, 0)

    def _const_spec(arr):
        zeros = (0,) * arr.ndim
        return pl.BlockSpec(arr.shape, lambda b, n, _z=zeros: _z)

    in_specs = [
        pl.BlockSpec((1, 1, T, dt), tile_map),
        pl.BlockSpec((1, 1, 1, ds), tile_map),
        pl.BlockSpec((1, 1, T, in_dim), tile_map),
    ] + [_const_spec(w) for w in weights]

    out = pl.pallas_call(
        _make_kernel(cfg),
        out_shape=jax.ShapeDtypeStruct((B, N, S, 1), jnp.float32),
        grid=(B, N),
        in_specs=in_specs,
        out_specs=pl.BlockSpec((1, 1, S, 1), tile_map),
        compiler_params=pltpu.CompilerParams(
            dimension_semantics=("parallel", "parallel")),
    )(tem_in, spa_in, data_in, *weights)
    return out                                            # [B, N, S, 1]


# ----------------------------- parameters ----------------------------------

def _linear_pt(key, din, dout):
    """PyTorch nn.Linear init; weight returned as [din, dout]."""
    k1, k2 = jax.random.split(key)
    s = 1.0 / np.sqrt(din)
    W = jax.random.uniform(k1, (din, dout), jnp.float32, -s, s)
    b = jax.random.uniform(k2, (dout,), jnp.float32, -s, s)
    return W, b


def _mlp_row_params(key, d, num_blocks):
    """BasicBlocks acting on the last (feature) axis. W:[nb,d,d]  P:[nb,3,d]."""
    Ws, Ps = [], []
    for i in range(num_blocks):
        W, b = _linear_pt(jax.random.fold_in(key, i), d, d)
        Ws.append(W)
        Ps.append(jnp.stack([b, jnp.ones((d,), jnp.float32),
                             jnp.zeros((d,), jnp.float32)]))  # bias, ln_g, ln_b
    return dict(W=jnp.stack(Ws), P=jnp.stack(Ps))


def _mlp_time_params(key, t, num_blocks):
    """BasicBlocks acting on the time axis. W:[nb,t,t] ([out,in])  P:[nb,3,t,1]."""
    Ws, Ps = [], []
    for i in range(num_blocks):
        W, b = _linear_pt(jax.random.fold_in(key, i), t, t)
        Ws.append(W.T)
        Ps.append(jnp.stack([b, jnp.ones((t,), jnp.float32),
                             jnp.zeros((t,), jnp.float32)])[..., None])
    return dict(W=jnp.stack(Ws), P=jnp.stack(Ps))


def init_params(key, cfg):
    ks = jax.random.split(key, 16)
    dt = cfg.tod_embedding_dim + cfg.dow_embedding_dim
    ds = cfg.dsp + cfg.dsu
    dtot = dt + ds + 96
    p = {}
    p["tod_table"] = 0.02 * jax.random.normal(
        ks[0], (cfg.steps_per_day, cfg.tod_embedding_dim), jnp.float32)
    p["dow_table"] = 0.02 * jax.random.normal(
        ks[1], (7, cfg.dow_embedding_dim), jnp.float32)
    # TODO(synk): SpatialEmbedding class was not provided; modeled as two
    # embedding tables (personalized dsp / universal dsu) indexed by node id.
    p["spa_n_table"] = 0.02 * jax.random.normal(
        ks[2], (cfg.num_nodes, cfg.dsp), jnp.float32)
    p["spa_u_table"] = 0.02 * jax.random.normal(
        ks[3], (cfg.num_nodes, cfg.dsu), jnp.float32)

    dW, db = _linear_pt(ks[4], cfg.input_dim, 96)
    p["data_W"] = dW                          # [input_dim, 96]
    p["data_b"] = db[None, :]                 # [1, 96]
    p["data_l"] = jax.random.normal(ks[13], (96,), jnp.float32)[None, :]

    p["MLPA"] = _mlp_row_params(ks[5], dt, 1)
    p["MLPB"] = _mlp_row_params(ks[6], ds, 1)
    p["MLPC"] = _mlp_row_params(ks[7], 96, 1)
    p["MLPD"] = _mlp_row_params(ks[8], dt + ds, 1)
    p["MLPE"] = _mlp_row_params(ks[9], dtot, 3)
    p["MLPF"] = _mlp_time_params(ks[10], cfg.in_steps, 2)

    sW, sb = _linear_pt(ks[11], cfg.in_steps, cfg.out_steps)
    p["steps_W"] = sW.T                       # [out_steps, in_steps]
    p["steps_b"] = sb[:, None]                # [out_steps, 1]

    oW, ob = _linear_pt(ks[12], dtot, 1)
    p["out_W"] = oW.T                         # [1, dtot]
    p["out_b"] = ob[None, :]                  # [1, 1]
    return p


# ----------------------------- forward -------------------------------------

def fedci_forward(params, x, node_indices, cfg):
    # x: [B, T, N, 3] (channel 0 = data, 1 = tod in [0,1), 2 = dow in [0,7))
    tod = x[..., 1]
    dow = x[..., 2]
    data = x[..., : cfg.input_dim]

    # tiny XLA glue: gathers + index/data transposes into [B, N, T, ...] layout
    tod_idx = jnp.transpose((tod * cfg.steps_per_day).astype(jnp.int32), (0, 2, 1))
    dow_idx = jnp.transpose(dow.astype(jnp.int32), (0, 2, 1))
    tem_in = jnp.concatenate([params["tod_table"][tod_idx],
                              params["dow_table"][dow_idx]], axis=-1)   # [B,N,T,dt]
    spa_in = jnp.concatenate([params["spa_n_table"][node_indices],
                              params["spa_u_table"][node_indices]],
                             axis=-1)[:, :, None, :]                    # [B,N,1,ds]
    data_in = jnp.transpose(data, (0, 2, 1, 3))                         # [B,N,T,in]

    out = _fused_call(params, tem_in, spa_in, data_in, cfg)             # [B,N,S,1]
    return jnp.transpose(out, (0, 2, 1, 3))                             # [B,S,N,1]


# ----------------------------- main -----------------------------------------

if __name__ == "__main__":
    cfg = Cfg()
    B, T, N = 2, cfg.in_steps, cfg.num_nodes

    key = jax.random.PRNGKey(0)
    kp, kd, kt, kw = jax.random.split(key, 4)
    params = init_params(kp, cfg)

    data_ch = jax.random.normal(kd, (B, T, N, 1), jnp.float32)
    tod_ch = jax.random.uniform(kt, (B, T, N, 1), jnp.float32, 0.0, 0.999)
    dow_ch = jax.random.randint(kw, (B, T, N, 1), 0, 7).astype(jnp.float32)
    x = jnp.concatenate([data_ch, tod_ch, dow_ch], axis=-1)             # [B,T,N,3]
    node_indices = jnp.tile(jnp.arange(N, dtype=jnp.int32)[None, :], (B, 1))

    fwd = jax.jit(functools.partial(fedci_forward, cfg=cfg))
    out = jax.block_until_ready(fwd(params, x, node_indices))

    expected = (B, cfg.out_steps, N, 1)
    assert out.shape == expected, (out.shape, expected)
    assert bool(jnp.all(jnp.isfinite(out)))
    print("KERNEL_OK")
</pallas_src>

<mosaic_0001>
module attributes {stable_mosaic.version = 11 : i64} {
  func.func @kernel(%arg0: i32, %arg1: i32, %arg2: memref<1x1x8x16xf32, #tpu.memory_space<vmem>>, %arg3: memref<1x1x1x16xf32, #tpu.memory_space<vmem>>, %arg4: memref<1x1x8x1xf32, #tpu.memory_space<vmem>>, %arg5: memref<1x16x16xf32, #tpu.memory_space<vmem>>, %arg6: memref<1x3x16xf32, #tpu.memory_space<vmem>>, %arg7: memref<1x16x16xf32, #tpu.memory_space<vmem>>, %arg8: memref<1x3x16xf32, #tpu.memory_space<vmem>>, %arg9: memref<1x32x32xf32, #tpu.memory_space<vmem>>, %arg10: memref<1x3x32xf32, #tpu.memory_space<vmem>>, %arg11: memref<1x96xf32, #tpu.memory_space<vmem>>, %arg12: memref<1x96xf32, #tpu.memory_space<vmem>>, %arg13: memref<1x96xf32, #tpu.memory_space<vmem>>, %arg14: memref<1x96x96xf32, #tpu.memory_space<vmem>>, %arg15: memref<1x3x96xf32, #tpu.memory_space<vmem>>, %arg16: memref<3x128x128xf32, #tpu.memory_space<vmem>>, %arg17: memref<3x3x128xf32, #tpu.memory_space<vmem>>, %arg18: memref<2x8x8xf32, #tpu.memory_space<vmem>>, %arg19: memref<2x3x8x1xf32, #tpu.memory_space<vmem>>, %arg20: memref<4x8xf32, #tpu.memory_space<vmem>>, %arg21: memref<4x1xf32, #tpu.memory_space<vmem>>, %arg22: memref<1x128xf32, #tpu.memory_space<vmem>>, %arg23: memref<1x1xf32, #tpu.memory_space<vmem>>, %arg24: memref<1x1x4x1xf32, #tpu.memory_space<vmem>>) attributes {dimension_semantics = [#tpu.dimension_semantics<parallel>, #tpu.dimension_semantics<parallel>], iteration_bounds = array<i64: 2, 4>, scalar_prefetch = 0 : i64, scratch_operands = 0 : i64, tpu.core_type = #tpu.core_type<tc>, window_params = [{transform_indices = @transform_0, window_bounds = array<i64: 1, 1, 8, 16>}, {transform_indices = @transform_1, window_bounds = array<i64: 1, 1, 1, 16>}, {transform_indices = @transform_2, window_bounds = array<i64: 1, 1, 8, 1>}, {pipeline_mode = #tpu.pipeline_mode<synchronous>, transform_indices = @transform_3, window_bounds = array<i64: 1, 16, 16>}, {pipeline_mode = #tpu.pipeline_mode<synchronous>, transform_indices = @transform_4, window_bounds = array<i64: 1, 3, 16>}, {pipeline_mode = #tpu.pipeline_mode<synchronous>, transform_indices = @transform_5, window_bounds = array<i64: 1, 16, 16>}, {pipeline_mode = #tpu.pipeline_mode<synchronous>, transform_indices = @transform_6, window_bounds = array<i64: 1, 3, 16>}, {pipeline_mode = #tpu.pipeline_mode<synchronous>, transform_indices = @transform_7, window_bounds = array<i64: 1, 32, 32>}, {pipeline_mode = #tpu.pipeline_mode<synchronous>, transform_indices = @transform_8, window_bounds = array<i64: 1, 3, 32>}, {pipeline_mode = #tpu.pipeline_mode<synchronous>, transform_indices = @transform_9, window_bounds = array<i64: 1, 96>}, {pipeline_mode = #tpu.pipeline_mode<synchronous>, transform_indices = @transform_10, window_bounds = array<i64: 1, 96>}, {pipeline_mode = #tpu.pipeline_mode<synchronous>, transform_indices = @transform_11, window_bounds = array<i64: 1, 96>}, {pipeline_mode = #tpu.pipeline_mode<synchronous>, transform_indices = @transform_12, window_bounds = array<i64: 1, 96, 96>}, {pipeline_mode = #tpu.pipeline_mode<synchronous>, transform_indices = @transform_13, window_bounds = array<i64: 1, 3, 96>}, {pipeline_mode = #tpu.pipeline_mode<synchronous>, transform_indices = @transform_14, window_bounds = array<i64: 3, 128, 128>}, {pipeline_mode = #tpu.pipeline_mode<synchronous>, transform_indices = @transform_15, window_bounds = array<i64: 3, 3, 128>}, {pipeline_mode = #tpu.pipeline_mode<synchronous>, transform_indices = @transform_16, window_bounds = array<i64: 2, 8, 8>}, {pipeline_mode = #tpu.pipeline_mode<synchronous>, transform_indices = @transform_17, window_bounds = array<i64: 2, 3, 8, 1>}, {pipeline_mode = #tpu.pipeline_mode<synchronous>, transform_indices = @transform_18, window_bounds = array<i64: 4, 8>}, {pipeline_mode = #tpu.pipeline_mode<synchronous>, transform_indices = @transform_19, window_bounds = array<i64: 4, 1>}, {pipeline_mode = #tpu.pipeline_mode<synchronous>, transform_indices = @transform_20, window_bounds = array<i64: 1, 128>}, {pipeline_mode = #tpu.pipeline_mode<synchronous>, transform_indices = @transform_21, window_bounds = array<i64: 1, 1>}, {transform_indices = @transform_22, window_bounds = array<i64: 1, 1, 4, 1>}]} {
    %c0 = arith.constant 0 : index
    %c0_0 = arith.constant 0 : index
    %c0_1 = arith.constant 0 : index
    %c0_2 = arith.constant 0 : index
    %0 = vector.load %arg2[%c0, %c0_0, %c0_1, %c0_2] : memref<1x1x8x16xf32, #tpu.memory_space<vmem>>, vector<1x1x8x16xf32>
    %1 = vector.shape_cast %0 : vector<1x1x8x16xf32> to vector<8x16xf32>
    %c0_3 = arith.constant 0 : index
    %c0_4 = arith.constant 0 : index
    %c0_5 = arith.constant 0 : index
    %c0_6 = arith.constant 0 : index
    %2 = vector.load %arg3[%c0_3, %c0_4, %c0_5, %c0_6] : memref<1x1x1x16xf32, #tpu.memory_space<vmem>>, vector<1x1x1x16xf32>
    %3 = vector.shape_cast %2 : vector<1x1x1x16xf32> to vector<1x16xf32>
    %c0_7 = arith.constant 0 : index
    %c0_8 = arith.constant 0 : index
    %c0_9 = arith.constant 0 : index
    %c0_10 = arith.constant 0 : index
    %4 = vector.load %arg4[%c0_7, %c0_8, %c0_9, %c0_10] : memref<1x1x8x1xf32, #tpu.memory_space<vmem>>, vector<1x1x8x1xf32>
    %5 = vector.shape_cast %4 : vector<1x1x8x1xf32> to vector<8x1xf32>
    %c0_11 = arith.constant 0 : index
    %c0_12 = arith.constant 0 : index
    %c0_13 = arith.constant 0 : index
    %6 = vector.load %arg5[%c0_11, %c0_12, %c0_13] : memref<1x16x16xf32, #tpu.memory_space<vmem>>, vector<1x16x16xf32>
    %7 = vector.shape_cast %6 : vector<1x16x16xf32> to vector<16x16xf32>
    %c0_14 = arith.constant 0 : index
    %c0_15 = arith.constant 0 : index
    %c0_16 = arith.constant 0 : index
    %8 = vector.load %arg6[%c0_14, %c0_15, %c0_16] : memref<1x3x16xf32, #tpu.memory_space<vmem>>, vector<1x3x16xf32>
    %9 = vector.shape_cast %8 : vector<1x3x16xf32> to vector<3x16xf32>
    %cst = arith.constant dense<0.000000e+00> : vector<8x16xf32>
    %10 = tpu.matmul %1, %7, %cst {dimension_numbers = #tpu.dot_dimension_numbers<[1], [0], [0], [1], [0, 0, 1, 1], [], []>} : vector<8x16xf32>, vector<16x16xf32>, vector<8x16xf32> -> vector<8x16xf32>
    %11 = vector.extract_strided_slice %9 {offsets = [0, 0], sizes = [1, 16], strides = [1, 1]} : vector<3x16xf32> to vector<1x16xf32>
    %12 = vector.broadcast %11 : vector<1x16xf32> to vector<8x16xf32>
    %13 = arith.addf %10, %12 : vector<8x16xf32>
    %cst_17 = arith.constant dense<0.000000e+00> : vector<8xf32>
    %14 = vector.multi_reduction <add>, %13, %cst_17 [1] : vector<8x16xf32> to vector<8xf32>
    %15 = vector.shape_cast %14 : vector<8xf32> to vector<8x1xf32>
    %cst_18 = arith.constant 6.250000e-02 : f32
    %16 = vector.broadcast %cst_18 : f32 to vector<8x1xf32>
    %17 = arith.mulf %15, %16 : vector<8x1xf32>
    %18 = arith.mulf %13, %13 : vector<8x16xf32>
    %cst_19 = arith.constant dense<0.000000e+00> : vector<8xf32>
    %19 = vector.multi_reduction <add>, %18, %cst_19 [1] : vector<8x16xf32> to vector<8xf32>
    %20 = vector.shape_cast %19 : vector<8xf32> to vector<8x1xf32>
    %cst_20 = arith.constant 6.250000e-02 : f32
    %21 = vector.broadcast %cst_20 : f32 to vector<8x1xf32>
    %22 = arith.mulf %20, %21 : vector<8x1xf32>
    %23 = vector.broadcast %17 : vector<8x1xf32> to vector<8x16xf32>
    %24 = arith.subf %13, %23 : vector<8x16xf32>
    %25 = arith.mulf %17, %17 : vector<8x1xf32>
    %26 = arith.subf %22, %25 : vector<8x1xf32>
    %cst_21 = arith.constant 9.99999974E-6 : f32
    %27 = vector.broadcast %cst_21 : f32 to vector<8x1xf32>
    %28 = arith.addf %26, %27 : vector<8x1xf32>
    %29 = math.rsqrt %28 : vector<8x1xf32>
    %30 = vector.broadcast %29 : vector<8x1xf32> to vector<8x16xf32>
    %31 = arith.mulf %24, %30 : vector<8x16xf32>
    %32 = vector.extract_strided_slice %9 {offsets = [1, 0], sizes = [1, 16], strides = [1, 1]} : vector<3x16xf32> to vector<1x16xf32>
    %33 = vector.broadcast %32 : vector<1x16xf32> to vector<8x16xf32>
    %34 = arith.mulf %31, %33 : vector<8x16xf32>
    %35 = vector.extract_strided_slice %9 {offsets = [2, 0], sizes = [1, 16], strides = [1, 1]} : vector<3x16xf32> to vector<1x16xf32>
    %36 = vector.broadcast %35 : vector<1x16xf32> to vector<8x16xf32>
    %37 = arith.addf %34, %36 : vector<8x16xf32>
    %cst_22 = arith.constant 0.000000e+00 : f32
    %38 = vector.broadcast %cst_22 : f32 to vector<8x16xf32>
    %39 = arith.maximumf %37, %38 : vector<8x16xf32>
    %40 = arith.addf %39, %1 : vector<8x16xf32>
    %41 = vector.shape_cast %3 : vector<1x16xf32> to vector<1x16xf32>
    %42 = vector.broadcast %41 : vector<1x16xf32> to vector<8x16xf32>
    %c0_23 = arith.constant 0 : index
    %c0_24 = arith.constant 0 : index
    %c0_25 = arith.constant 0 : index
    %43 = vector.load %arg7[%c0_23, %c0_24, %c0_25] : memref<1x16x16xf32, #tpu.memory_space<vmem>>, vector<1x16x16xf32>
    %44 = vector.shape_cast %43 : vector<1x16x16xf32> to vector<16x16xf32>
    %c0_26 = arith.constant 0 : index
    %c0_27 = arith.constant 0 : index
    %c0_28 = arith.constant 0 : index
    %45 = vector.load %arg8[%c0_26, %c0_27, %c0_28] : memref<1x3x16xf32, #tpu.memory_space<vmem>>, vector<1x3x16xf32>
    %46 = vector.shape_cast %45 : vector<1x3x16xf32> to vector<3x16xf32>
    %cst_29 = arith.constant dense<0.000000e+00> : vector<8x16xf32>
    %47 = tpu.matmul %42, %44, %cst_29 {dimension_numbers = #tpu.dot_dimension_numbers<[1], [0], [0], [1], [0, 0, 1, 1], [], []>} : vector<8x16xf32>, vector<16x16xf32>, vector<8x16xf32> -> vector<8x16xf32>
    %48 = vector.extract_strided_slice %46 {offsets = [0, 0], sizes = [1, 16], strides = [1, 1]} : vector<3x16xf32> to vector<1x16xf32>
    %49 = vector.broadcast %48 : vector<1x16xf32> to vector<8x16xf32>
    %50 = arith.addf %47, %49 : vector<8x16xf32>
    %cst_30 = arith.constant dense<0.000000e+00> : vector<8xf32>
    %51 = vector.multi_reduction <add>, %50, %cst_30 [1] : vector<8x16xf32> to vector<8xf32>
    %52 = vector.shape_cast %51 : vector<8xf32> to vector<8x1xf32>
    %cst_31 = arith.constant 6.250000e-02 : f32
    %53 = vector.broadcast %cst_31 : f32 to vector<8x1xf32>
    %54 = arith.mulf %52, %53 : vector<8x1xf32>
    %55 = arith.mulf %50, %50 : vector<8x16xf32>
    %cst_32 = arith.constant dense<0.000000e+00> : vector<8xf32>
    %56 = vector.multi_reduction <add>, %55, %cst_32 [1] : vector<8x16xf32> to vector<8xf32>
    %57 = vector.shape_cast %56 : vector<8xf32> to vector<8x1xf32>
    %cst_33 = arith.constant 6.250000e-02 : f32
    %58 = vector.broadcast %cst_33 : f32 to vector<8x1xf32>
    %59 = arith.mulf %57, %58 : vector<8x1xf32>
    %60 = vector.broadcast %54 : vector<8x1xf32> to vector<8x16xf32>
    %61 = arith.subf %50, %60 : vector<8x16xf32>
    %62 = arith.mulf %54, %54 : vector<8x1xf32>
    %63 = arith.subf %59, %62 : vector<8x1xf32>
    %cst_34 = arith.constant 9.99999974E-6 : f32
    %64 = vector.broadcast %cst_34 : f32 to vector<8x1xf32>
    %65 = arith.addf %63, %64 : vector<8x1xf32>
    %66 = math.rsqrt %65 : vector<8x1xf32>
    %67 = vector.broadcast %66 : vector<8x1xf32> to vector<8x16xf32>
    %68 = arith.mulf %61, %67 : vector<8x16xf32>
    %69 = vector.extract_strided_slice %46 {offsets = [1, 0], sizes = [1, 16], strides = [1, 1]} : vector<3x16xf32> to vector<1x16xf32>
    %70 = vector.broadcast %69 : vector<1x16xf32> to vector<8x16xf32>
    %71 = arith.mulf %68, %70 : vector<8x16xf32>
    %72 = vector.extract_strided_slice %46 {offsets = [2, 0], sizes = [1, 16], strides = [1, 1]} : vector<3x16xf32> to vector<1x16xf32>
    %73 = vector.broadcast %72 : vector<1x16xf32> to vector<8x16xf32>
    %74 = arith.addf %71, %73 : vector<8x16xf32>
    %cst_35 = arith.constant 0.000000e+00 : f32
    %75 = vector.broadcast %cst_35 : f32 to vector<8x16xf32>
    %76 = arith.maximumf %74, %75 : vector<8x16xf32>
    %77 = arith.addf %76, %42 : vector<8x16xf32>
    %78 = tpu.concatenate %77, %40 in 1 : vector<8x16xf32>, vector<8x16xf32> -> vector<8x32xf32>
    %c0_36 = arith.constant 0 : index
    %c0_37 = arith.constant 0 : index
    %c0_38 = arith.constant 0 : index
    %79 = vector.load %arg9[%c0_36, %c0_37, %c0_38] : memref<1x32x32xf32, #tpu.memory_space<vmem>>, vector<1x32x32xf32>
    %80 = vector.shape_cast %79 : vector<1x32x32xf32> to vector<32x32xf32>
    %c0_39 = arith.constant 0 : index
    %c0_40 = arith.constant 0 : index
    %c0_41 = arith.constant 0 : index
    %81 = vector.load %arg10[%c0_39, %c0_40, %c0_41] : memref<1x3x32xf32, #tpu.memory_space<vmem>>, vector<1x3x32xf32>
    %82 = vector.shape_cast %81 : vector<1x3x32xf32> to vector<3x32xf32>
    %cst_42 = arith.constant dense<0.000000e+00> : vector<8x32xf32>
    %83 = tpu.matmul %78, %80, %cst_42 {dimension_numbers = #tpu.dot_dimension_numbers<[1], [0], [0], [1], [0, 0, 1, 1], [], []>} : vector<8x32xf32>, vector<32x32xf32>, vector<8x32xf32> -> vector<8x32xf32>
    %84 = vector.extract_strided_slice %82 {offsets = [0, 0], sizes = [1, 32], strides = [1, 1]} : vector<3x32xf32> to vector<1x32xf32>
    %85 = vector.broadcast %84 : vector<1x32xf32> to vector<8x32xf32>
    %86 = arith.addf %83, %85 : vector<8x32xf32>
    %cst_43 = arith.constant dense<0.000000e+00> : vector<8xf32>
    %87 = vector.multi_reduction <add>, %86, %cst_43 [1] : vector<8x32xf32> to vector<8xf32>
    %88 = vector.shape_cast %87 : vector<8xf32> to vector<8x1xf32>
    %cst_44 = arith.constant 3.125000e-02 : f32
    %89 = vector.broadcast %cst_44 : f32 to vector<8x1xf32>
    %90 = arith.mulf %88, %89 : vector<8x1xf32>
    %91 = arith.mulf %86, %86 : vector<8x32xf32>
    %cst_45 = arith.constant dense<0.000000e+00> : vector<8xf32>
    %92 = vector.multi_reduction <add>, %91, %cst_45 [1] : vector<8x32xf32> to vector<8xf32>
    %93 = vector.shape_cast %92 : vector<8xf32> to vector<8x1xf32>
    %cst_46 = arith.constant 3.125000e-02 : f32
    %94 = vector.broadcast %cst_46 : f32 to vector<8x1xf32>
    %95 = arith.mulf %93, %94 : vector<8x1xf32>
    %96 = vector.broadcast %90 : vector<8x1xf32> to vector<8x32xf32>
    %97 = arith.subf %86, %96 : vector<8x32xf32>
    %98 = arith.mulf %90, %90 : vector<8x1xf32>
    %99 = arith.subf %95, %98 : vector<8x1xf32>
    %cst_47 = arith.constant 9.99999974E-6 : f32
    %100 = vector.broadcast %cst_47 : f32 to vector<8x1xf32>
    %101 = arith.addf %99, %100 : vector<8x1xf32>
    %102 = math.rsqrt %101 : vector<8x1xf32>
    %103 = vector.broadcast %102 : vector<8x1xf32> to vector<8x32xf32>
    %104 = arith.mulf %97, %103 : vector<8x32xf32>
    %105 = vector.extract_strided_slice %82 {offsets = [1, 0], sizes = [1, 32], strides = [1, 1]} : vector<3x32xf32> to vector<1x32xf32>
    %106 = vector.broadcast %105 : vector<1x32xf32> to vector<8x32xf32>
    %107 = arith.mulf %104, %106 : vector<8x32xf32>
    %108 = vector.extract_strided_slice %82 {offsets = [2, 0], sizes = [1, 32], strides = [1, 1]} : vector<3x32xf32> to vector<1x32xf32>
    %109 = vector.broadcast %108 : vector<1x32xf32> to vector<8x32xf32>
    %110 = arith.addf %107, %109 : vector<8x32xf32>
    %cst_48 = arith.constant 0.000000e+00 : f32
    %111 = vector.broadcast %cst_48 : f32 to vector<8x32xf32>
    %112 = arith.maximumf %110, %111 : vector<8x32xf32>
    %113 = arith.addf %112, %78 : vector<8x32xf32>
    %c0_49 = arith.constant 0 : index
    %c0_50 = arith.constant 0 : index
    %114 = vector.load %arg11[%c0_49, %c0_50] : memref<1x96xf32, #tpu.memory_space<vmem>>, vector<1x96xf32>
    %115 = vector.broadcast %5 : vector<8x1xf32> to vector<8x96xf32>
    %116 = vector.broadcast %114 : vector<1x96xf32> to vector<8x96xf32>
    %117 = arith.mulf %115, %116 : vector<8x96xf32>
    %c0_51 = arith.constant 0 : index
    %c0_52 = arith.constant 0 : index
    %118 = vector.load %arg12[%c0_51, %c0_52] : memref<1x96xf32, #tpu.memory_space<vmem>>, vector<1x96xf32>
    %119 = vector.broadcast %118 : vector<1x96xf32> to vector<8x96xf32>
    %120 = arith.addf %117, %119 : vector<8x96xf32>
    %c0_53 = arith.constant 0 : index
    %c0_54 = arith.constant 0 : index
    %c0_55 = arith.constant 0 : index
    %121 = vector.load %arg14[%c0_53, %c0_54, %c0_55] : memref<1x96x96xf32, #tpu.memory_space<vmem>>, vector<1x96x96xf32>
    %122 = vector.shape_cast %121 : vector<1x96x96xf32> to vector<96x96xf32>
    %c0_56 = arith.constant 0 : index
    %c0_57 = arith.constant 0 : index
    %c0_58 = arith.constant 0 : index
    %123 = vector.load %arg15[%c0_56, %c0_57, %c0_58] : memref<1x3x96xf32, #tpu.memory_space<vmem>>, vector<1x3x96xf32>
    %124 = vector.shape_cast %123 : vector<1x3x96xf32> to vector<3x96xf32>
    %cst_59 = arith.constant dense<0.000000e+00> : vector<8x96xf32>
    %125 = tpu.matmul %120, %122, %cst_59 {dimension_numbers = #tpu.dot_dimension_numbers<[1], [0], [0], [1], [0, 0, 1, 1], [], []>} : vector<8x96xf32>, vector<96x96xf32>, vector<8x96xf32> -> vector<8x96xf32>
    %126 = vector.extract_strided_slice %124 {offsets = [0, 0], sizes = [1, 96], strides = [1, 1]} : vector<3x96xf32> to vector<1x96xf32>
    %127 = vector.broadcast %126 : vector<1x96xf32> to vector<8x96xf32>
    %128 = arith.addf %125, %127 : vector<8x96xf32>
    %cst_60 = arith.constant dense<0.000000e+00> : vector<8xf32>
    %129 = vector.multi_reduction <add>, %128, %cst_60 [1] : vector<8x96xf32> to vector<8xf32>
    %130 = vector.shape_cast %129 : vector<8xf32> to vector<8x1xf32>
    %cst_61 = arith.constant 0.010416667 : f32
    %131 = vector.broadcast %cst_61 : f32 to vector<8x1xf32>
    %132 = arith.mulf %130, %131 : vector<8x1xf32>
    %133 = arith.mulf %128, %128 : vector<8x96xf32>
    %cst_62 = arith.constant dense<0.000000e+00> : vector<8xf32>
    %134 = vector.multi_reduction <add>, %133, %cst_62 [1] : vector<8x96xf32> to vector<8xf32>
    %135 = vector.shape_cast %134 : vector<8xf32> to vector<8x1xf32>
    %cst_63 = arith.constant 0.010416667 : f32
    %136 = vector.broadcast %cst_63 : f32 to vector<8x1xf32>
    %137 = arith.mulf %135, %136 : vector<8x1xf32>
    %138 = vector.broadcast %132 : vector<8x1xf32> to vector<8x96xf32>
    %139 = arith.subf %128, %138 : vector<8x96xf32>
    %140 = arith.mulf %132, %132 : vector<8x1xf32>
    %141 = arith.subf %137, %140 : vector<8x1xf32>
    %cst_64 = arith.constant 9.99999974E-6 : f32
    %142 = vector.broadcast %cst_64 : f32 to vector<8x1xf32>
    %143 = arith.addf %141, %142 : vector<8x1xf32>
    %144 = math.rsqrt %143 : vector<8x1xf32>
    %145 = vector.broadcast %144 : vector<8x1xf32> to vector<8x96xf32>
    %146 = arith.mulf %139, %145 : vector<8x96xf32>
    %147 = vector.extract_strided_slice %124 {offsets = [1, 0], sizes = [1, 96], strides = [1, 1]} : vector<3x96xf32> to vector<1x96xf32>
    %148 = vector.broadcast %147 : vector<1x96xf32> to vector<8x96xf32>
    %149 = arith.mulf %146, %148 : vector<8x96xf32>
    %150 = vector.extract_strided_slice %124 {offsets = [2, 0], sizes = [1, 96], strides = [1, 1]} : vector<3x96xf32> to vector<1x96xf32>
    %151 = vector.broadcast %150 : vector<1x96xf32> to vector<8x96xf32>
    %152 = arith.addf %149, %151 : vector<8x96xf32>
    %cst_65 = arith.constant 0.000000e+00 : f32
    %153 = vector.broadcast %cst_65 : f32 to vector<8x96xf32>
    %154 = arith.maximumf %152, %153 : vector<8x96xf32>
    %155 = arith.addf %154, %120 : vector<8x96xf32>
    %c0_66 = arith.constant 0 : index
    %c0_67 = arith.constant 0 : index
    %156 = vector.load %arg13[%c0_66, %c0_67] : memref<1x96xf32, #tpu.memory_space<vmem>>, vector<1x96xf32>
    %157 = vector.broadcast %156 : vector<1x96xf32> to vector<8x96xf32>
    %158 = arith.addf %155, %157 : vector<8x96xf32>
    %159 = tpu.concatenate %113, %158 in 1 : vector<8x32xf32>, vector<8x96xf32> -> vector<8x128xf32>
    %c0_68 = arith.constant 0 : index
    %c0_69 = arith.constant 0 : index
    %c0_70 = arith.constant 0 : index
    %160 = vector.load %arg16[%c0_68, %c0_69, %c0_70] : memref<3x128x128xf32, #tpu.memory_space<vmem>>, vector<1x128x128xf32>
    %161 = vector.shape_cast %160 : vector<1x128x128xf32> to vector<128x128xf32>
    %c0_71 = arith.constant 0 : index
    %c0_72 = arith.constant 0 : index
    %c0_73 = arith.constant 0 : index
    %162 = vector.load %arg17[%c0_71, %c0_72, %c0_73] : memref<3x3x128xf32, #tpu.memory_space<vmem>>, vector<1x3x128xf32>
    %163 = vector.shape_cast %162 : vector<1x3x128xf32> to vector<3x128xf32>
    %cst_74 = arith.constant dense<0.000000e+00> : vector<8x128xf32>
    %164 = tpu.matmul %159, %161, %cst_74 {dimension_numbers = #tpu.dot_dimension_numbers<[1], [0], [0], [1], [0, 0, 1, 1], [], []>} : vector<8x128xf32>, vector<128x128xf32>, vector<8x128xf32> -> vector<8x128xf32>
    %165 = vector.extract_strided_slice %163 {offsets = [0, 0], sizes = [1, 128], strides = [1, 1]} : vector<3x128xf32> to vector<1x128xf32>
    %166 = vector.broadcast %165 : vector<1x128xf32> to vector<8x128xf32>
    %167 = arith.addf %164, %166 : vector<8x128xf32>
    %cst_75 = arith.constant dense<0.000000e+00> : vector<8xf32>
    %168 = vector.multi_reduction <add>, %167, %cst_75 [1] : vector<8x128xf32> to vector<8xf32>
    %169 = vector.shape_cast %168 : vector<8xf32> to vector<8x1xf32>
    %cst_76 = arith.constant 7.812500e-03 : f32
    %170 = vector.broadcast %cst_76 : f32 to vector<8x1xf32>
    %171 = arith.mulf %169, %170 : vector<8x1xf32>
    %172 = arith.mulf %167, %167 : vector<8x128xf32>
    %cst_77 = arith.constant dense<0.000000e+00> : vector<8xf32>
    %173 = vector.multi_reduction <add>, %172, %cst_77 [1] : vector<8x128xf32> to vector<8xf32>
    %174 = vector.shape_cast %173 : vector<8xf32> to vector<8x1xf32>
    %cst_78 = arith.constant 7.812500e-03 : f32
    %175 = vector.broadcast %cst_78 : f32 to vector<8x1xf32>
    %176 = arith.mulf %174, %175 : vector<8x1xf32>
    %177 = vector.broadcast %171 : vector<8x1xf32> to vector<8x128xf32>
    %178 = arith.subf %167, %177 : vector<8x128xf32>
    %179 = arith.mulf %171, %171 : vector<8x1xf32>
    %180 = arith.subf %176, %179 : vector<8x1xf32>
    %cst_79 = arith.constant 9.99999974E-6 : f32
    %181 = vector.broadcast %cst_79 : f32 to vector<8x1xf32>
    %182 = arith.addf %180, %181 : vector<8x1xf32>
    %183 = math.rsqrt %182 : vector<8x1xf32>
    %184 = vector.broadcast %183 : vector<8x1xf32> to vector<8x128xf32>
    %185 = arith.mulf %178, %184 : vector<8x128xf32>
    %186 = vector.extract_strided_slice %163 {offsets = [1, 0], sizes = [1, 128], strides = [1, 1]} : vector<3x128xf32> to vector<1x128xf32>
    %187 = vector.broadcast %186 : vector<1x128xf32> to vector<8x128xf32>
    %188 = arith.mulf %185, %187 : vector<8x128xf32>
    %189 = vector.extract_strided_slice %163 {offsets = [2, 0], sizes = [1, 128], strides = [1, 1]} : vector<3x128xf32> to vector<1x128xf32>
    %190 = vector.broadcast %189 : vector<1x128xf32> to vector<8x128xf32>
    %191 = arith.addf %188, %190 : vector<8x128xf32>
    %cst_80 = arith.constant 0.000000e+00 : f32
    %192 = vector.broadcast %cst_80 : f32 to vector<8x128xf32>
    %193 = arith.maximumf %191, %192 : vector<8x128xf32>
    %194 = arith.addf %193, %159 : vector<8x128xf32>
    %c1 = arith.constant 1 : index
    %c0_81 = arith.constant 0 : index
    %c0_82 = arith.constant 0 : index
    %195 = vector.load %arg16[%c1, %c0_81, %c0_82] : memref<3x128x128xf32, #tpu.memory_space<vmem>>, vector<1x128x128xf32>
    %196 = vector.shape_cast %195 : vector<1x128x128xf32> to vector<128x128xf32>
    %c1_83 = arith.constant 1 : index
    %c0_84 = arith.constant 0 : index
    %c0_85 = arith.constant 0 : index
    %197 = vector.load %arg17[%c1_83, %c0_84, %c0_85] : memref<3x3x128xf32, #tpu.memory_space<vmem>>, vector<1x3x128xf32>
    %198 = vector.shape_cast %197 : vector<1x3x128xf32> to vector<3x128xf32>
    %cst_86 = arith.constant dense<0.000000e+00> : vector<8x128xf32>
    %199 = tpu.matmul %194, %196, %cst_86 {dimension_numbers = #tpu.dot_dimension_numbers<[1], [0], [0], [1], [0, 0, 1, 1], [], []>} : vector<8x128xf32>, vector<128x128xf32>, vector<8x128xf32> -> vector<8x128xf32>
    %200 = vector.extract_strided_slice %198 {offsets = [0, 0], sizes = [1, 128], strides = [1, 1]} : vector<3x128xf32> to vector<1x128xf32>
    %201 = vector.broadcast %200 : vector<1x128xf32> to vector<8x128xf32>
    %202 = arith.addf %199, %201 : vector<8x128xf32>
    %cst_87 = arith.constant dense<0.000000e+00> : vector<8xf32>
    %203 = vector.multi_reduction <add>, %202, %cst_87 [1] : vector<8x128xf32> to vector<8xf32>
    %204 = vector.shape_cast %203 : vector<8xf32> to vector<8x1xf32>
    %cst_88 = arith.constant 7.812500e-03 : f32
    %205 = vector.broadcast %cst_88 : f32 to vector<8x1xf32>
    %206 = arith.mulf %204, %205 : vector<8x1xf32>
    %207 = arith.mulf %202, %202 : vector<8x128xf32>
    %cst_89 = arith.constant dense<0.000000e+00> : vector<8xf32>
    %208 = vector.multi_reduction <add>, %207, %cst_89 [1] : vector<8x128xf32> to vector<8xf32>
    %209 = vector.shape_cast %208 : vector<8xf32> to vector<8x1xf32>
    %cst_90 = arith.constant 7.812500e-03 : f32
    %210 = vector.broadcast %cst_90 : f32 to vector<8x1xf32>
    %211 = arith.mulf %209, %210 : vector<8x1xf32>
    %212 = vector.broadcast %206 : vector<8x1xf32> to vector<8x128xf32>
    %213 = arith.subf %202, %212 : vector<8x128xf32>
    %214 = arith.mulf %206, %206 : vector<8x1xf32>
    %215 = arith.subf %211, %214 : vector<8x1xf32>
    %cst_91 = arith.constant 9.99999974E-6 : f32
    %216 = vector.broadcast %cst_91 : f32 to vector<8x1xf32>
    %217 = arith.addf %215, %216 : vector<8x1xf32>
    %218 = math.rsqrt %217 : vector<8x1xf32>
    %219 = vector.broadcast %218 : vector<8x1xf32> to vector<8x128xf32>
    %220 = arith.mulf %213, %219 : vector<8x128xf32>
    %221 = vector.extract_strided_slice %198 {offsets = [1, 0], sizes = [1, 128], strides = [1, 1]} : vector<3x128xf32> to vector<1x128xf32>
    %222 = vector.broadcast %221 : vector<1x128xf32> to vector<8x128xf32>
    %223 = arith.mulf %220, %222 : vector<8x128xf32>
    %224 = vector.extract_strided_slice %198 {offsets = [2, 0], sizes = [1, 128], strides = [1, 1]} : vector<3x128xf32> to vector<1x128xf32>
    %225 = vector.broadcast %224 : vector<1x128xf32> to vector<8x128xf32>
    %226 = arith.addf %223, %225 : vector<8x128xf32>
    %cst_92 = arith.constant 0.000000e+00 : f32
    %227 = vector.broadcast %cst_92 : f32 to vector<8x128xf32>
    %228 = arith.maximumf %226, %227 : vector<8x128xf32>
    %229 = arith.addf %228, %194 : vector<8x128xf32>
    %c2 = arith.constant 2 : index
    %c0_93 = arith.constant 0 : index
    %c0_94 = arith.constant 0 : index
    %230 = vector.load %arg16[%c2, %c0_93, %c0_94] : memref<3x128x128xf32, #tpu.memory_space<vmem>>, vector<1x128x128xf32>
    %231 = vector.shape_cast %230 : vector<1x128x128xf32> to vector<128x128xf32>
    %c2_95 = arith.constant 2 : index
    %c0_96 = arith.constant 0 : index
    %c0_97 = arith.constant 0 : index
    %232 = vector.load %arg17[%c2_95, %c0_96, %c0_97] : memref<3x3x128xf32, #tpu.memory_space<vmem>>, vector<1x3x128xf32>
    %233 = vector.shape_cast %232 : vector<1x3x128xf32> to vector<3x128xf32>
    %cst_98 = arith.constant dense<0.000000e+00> : vector<8x128xf32>
    %234 = tpu.matmul %229, %231, %cst_98 {dimension_numbers = #tpu.dot_dimension_numbers<[1], [0], [0], [1], [0, 0, 1, 1], [], []>} : vector<8x128xf32>, vector<128x128xf32>, vector<8x128xf32> -> vector<8x128xf32>
    %235 = vector.extract_strided_slice %233 {offsets = [0, 0], sizes = [1, 128], strides = [1, 1]} : vector<3x128xf32> to vector<1x128xf32>
    %236 = vector.broadcast %235 : vector<1x128xf32> to vector<8x128xf32>
    %237 = arith.addf %234, %236 : vector<8x128xf32>
    %cst_99 = arith.constant dense<0.000000e+00> : vector<8xf32>
    %238 = vector.multi_reduction <add>, %237, %cst_99 [1] : vector<8x128xf32> to vector<8xf32>
    %239 = vector.shape_cast %238 : vector<8xf32> to vector<8x1xf32>
    %cst_100 = arith.constant 7.812500e-03 : f32
    %240 = vector.broadcast %cst_100 : f32 to vector<8x1xf32>
    %241 = arith.mulf %239, %240 : vector<8x1xf32>
    %242 = arith.mulf %237, %237 : vector<8x128xf32>
    %cst_101 = arith.constant dense<0.000000e+00> : vector<8xf32>
    %243 = vector.multi_reduction <add>, %242, %cst_101 [1] : vector<8x128xf32> to vector<8xf32>
    %244 = vector.shape_cast %243 : vector<8xf32> to vector<8x1xf32>
    %cst_102 = arith.constant 7.812500e-03 : f32
    %245 = vector.broadcast %cst_102 : f32 to vector<8x1xf32>
    %246 = arith.mulf %244, %245 : vector<8x1xf32>
    %247 = vector.broadcast %241 : vector<8x1xf32> to vector<8x128xf32>
    %248 = arith.subf %237, %247 : vector<8x128xf32>
    %249 = arith.mulf %241, %241 : vector<8x1xf32>
    %250 = arith.subf %246, %249 : vector<8x1xf32>
    %cst_103 = arith.constant 9.99999974E-6 : f32
    %251 = vector.broadcast %cst_103 : f32 to vector<8x1xf32>
    %252 = arith.addf %250, %251 : vector<8x1xf32>
    %253 = math.rsqrt %252 : vector<8x1xf32>
    %254 = vector.broadcast %253 : vector<8x1xf32> to vector<8x128xf32>
    %255 = arith.mulf %248, %254 : vector<8x128xf32>
    %256 = vector.extract_strided_slice %233 {offsets = [1, 0], sizes = [1, 128], strides = [1, 1]} : vector<3x128xf32> to vector<1x128xf32>
    %257 = vector.broadcast %256 : vector<1x128xf32> to vector<8x128xf32>
    %258 = arith.mulf %255, %257 : vector<8x128xf32>
    %259 = vector.extract_strided_slice %233 {offsets = [2, 0], sizes = [1, 128], strides = [1, 1]} : vector<3x128xf32> to vector<1x128xf32>
    %260 = vector.broadcast %259 : vector<1x128xf32> to vector<8x128xf32>
    %261 = arith.addf %258, %260 : vector<8x128xf32>
    %cst_104 = arith.constant 0.000000e+00 : f32
    %262 = vector.broadcast %cst_104 : f32 to vector<8x128xf32>
    %263 = arith.maximumf %261, %262 : vector<8x128xf32>
    %264 = arith.addf %263, %229 : vector<8x128xf32>
    %c0_105 = arith.constant 0 : index
    %c0_106 = arith.constant 0 : index
    %c0_107 = arith.constant 0 : index
    %265 = vector.load %arg18[%c0_105, %c0_106, %c0_107] : memref<2x8x8xf32, #tpu.memory_space<vmem>>, vector<1x8x8xf32>
    %266 = vector.shape_cast %265 : vector<1x8x8xf32> to vector<8x8xf32>
    %c0_108 = arith.constant 0 : index
    %c0_109 = arith.constant 0 : index
    %c0_110 = arith.constant 0 : index
    %c0_111 = arith.constant 0 : index
    %267 = vector.load %arg19[%c0_108, %c0_109, %c0_110, %c0_111] : memref<2x3x8x1xf32, #tpu.memory_space<vmem>>, vector<1x3x8x1xf32>
    %268 = vector.shape_cast %267 : vector<1x3x8x1xf32> to vector<3x8x1xf32>
    %cst_112 = arith.constant dense<0.000000e+00> : vector<8x128xf32>
    %269 = tpu.matmul %266, %264, %cst_112 {dimension_numbers = #tpu.dot_dimension_numbers<[1], [0], [0], [1], [0, 0, 1, 1], [], []>} : vector<8x8xf32>, vector<8x128xf32>, vector<8x128xf32> -> vector<8x128xf32>
    %270 = vector.extract_strided_slice %268 {offsets = [0, 0, 0], sizes = [1, 8, 1], strides = [1, 1, 1]} : vector<3x8x1xf32> to vector<1x8x1xf32>
    %271 = vector.shape_cast %270 : vector<1x8x1xf32> to vector<8x1xf32>
    %272 = vector.broadcast %271 : vector<8x1xf32> to vector<8x128xf32>
    %273 = arith.addf %269, %272 : vector<8x128xf32>
    %cst_113 = arith.constant dense<0.000000e+00> : vector<128xf32>
    %274 = vector.multi_reduction <add>, %273, %cst_113 [0] : vector<8x128xf32> to vector<128xf32>
    %275 = vector.shape_cast %274 : vector<128xf32> to vector<1x128xf32>
    %cst_114 = arith.constant 1.250000e-01 : f32
    %276 = vector.broadcast %cst_114 : f32 to vector<1x128xf32>
    %277 = arith.mulf %275, %276 : vector<1x128xf32>
    %278 = arith.mulf %273, %273 : vector<8x128xf32>
    %cst_115 = arith.constant dense<0.000000e+00> : vector<128xf32>
    %279 = vector.multi_reduction <add>, %278, %cst_115 [0] : vector<8x128xf32> to vector<128xf32>
    %280 = vector.shape_cast %279 : vector<128xf32> to vector<1x128xf32>
    %cst_116 = arith.constant 1.250000e-01 : f32
    %281 = vector.broadcast %cst_116 : f32 to vector<1x128xf32>
    %282 = arith.mulf %280, %281 : vector<1x128xf32>
    %283 = vector.broadcast %277 : vector<1x128xf32> to vector<8x128xf32>
    %284 = arith.subf %273, %283 : vector<8x128xf32>
    %285 = arith.mulf %277, %277 : vector<1x128xf32>
    %286 = arith.subf %282, %285 : vector<1x128xf32>
    %cst_117 = arith.constant 9.99999974E-6 : f32
    %287 = vector.broadcast %cst_117 : f32 to vector<1x128xf32>
    %288 = arith.addf %286, %287 : vector<1x128xf32>
    %289 = math.rsqrt %288 : vector<1x128xf32>
    %290 = vector.broadcast %289 : vector<1x128xf32> to vector<8x128xf32>
    %291 = arith.mulf %284, %290 : vector<8x128xf32>
    %292 = vector.extract_strided_slice %268 {offsets = [1, 0, 0], sizes = [1, 8, 1], strides = [1, 1, 1]} : vector<3x8x1xf32> to vector<1x8x1xf32>
    %293 = vector.shape_cast %292 : vector<1x8x1xf32> to vector<8x1xf32>
    %294 = vector.broadcast %293 : vector<8x1xf32> to vector<8x128xf32>
    %295 = arith.mulf %291, %294 : vector<8x128xf32>
    %296 = vector.extract_strided_slice %268 {offsets = [2, 0, 0], sizes = [1, 8, 1], strides = [1, 1, 1]} : vector<3x8x1xf32> to vector<1x8x1xf32>
    %297 = vector.shape_cast %296 : vector<1x8x1xf32> to vector<8x1xf32>
    %298 = vector.broadcast %297 : vector<8x1xf32> to vector<8x128xf32>
    %299 = arith.addf %295, %298 : vector<8x128xf32>
    %cst_118 = arith.constant 0.000000e+00 : f32
    %300 = vector.broadcast %cst_118 : f32 to vector<8x128xf32>
    %301 = arith.maximumf %299, %300 : vector<8x128xf32>
    %302 = arith.addf %301, %264 : vector<8x128xf32>
    %c1_119 = arith.constant 1 : index
    %c0_120 = arith.constant 0 : index
    %c0_121 = arith.constant 0 : index
    %303 = vector.load %arg18[%c1_119, %c0_120, %c0_121] : memref<2x8x8xf32, #tpu.memory_space<vmem>>, vector<1x8x8xf32>
    %304 = vector.shape_cast %303 : vector<1x8x8xf32> to vector<8x8xf32>
    %c1_122 = arith.constant 1 : index
    %c0_123 = arith.constant 0 : index
    %c0_124 = arith.constant 0 : index
    %c0_125 = arith.constant 0 : index
    %305 = vector.load %arg19[%c1_122, %c0_123, %c0_124, %c0_125] : memref<2x3x8x1xf32, #tpu.memory_space<vmem>>, vector<1x3x8x1xf32>
    %306 = vector.shape_cast %305 : vector<1x3x8x1xf32> to vector<3x8x1xf32>
    %cst_126 = arith.constant dense<0.000000e+00> : vector<8x128xf32>
    %307 = tpu.matmul %304, %302, %cst_126 {dimension_numbers = #tpu.dot_dimension_numbers<[1], [0], [0], [1], [0, 0, 1, 1], [], []>} : vector<8x8xf32>, vector<8x128xf32>, vector<8x128xf32> -> vector<8x128xf32>
    %308 = vector.extract_strided_slice %306 {offsets = [0, 0, 0], sizes = [1, 8, 1], strides = [1, 1, 1]} : vector<3x8x1xf32> to vector<1x8x1xf32>
    %309 = vector.shape_cast %308 : vector<1x8x1xf32> to vector<8x1xf32>
    %310 = vector.broadcast %309 : vector<8x1xf32> to vector<8x128xf32>
    %311 = arith.addf %307, %310 : vector<8x128xf32>
    %cst_127 = arith.constant dense<0.000000e+00> : vector<128xf32>
    %312 = vector.multi_reduction <add>, %311, %cst_127 [0] : vector<8x128xf32> to vector<128xf32>
    %313 = vector.shape_cast %312 : vector<128xf32> to vector<1x128xf32>
    %cst_128 = arith.constant 1.250000e-01 : f32
    %314 = vector.broadcast %cst_128 : f32 to vector<1x128xf32>
    %315 = arith.mulf %313, %314 : vector<1x128xf32>
    %316 = arith.mulf %311, %311 : vector<8x128xf32>
    %cst_129 = arith.constant dense<0.000000e+00> : vector<128xf32>
    %317 = vector.multi_reduction <add>, %316, %cst_129 [0] : vector<8x128xf32> to vector<128xf32>
    %318 = vector.shape_cast %317 : vector<128xf32> to vector<1x128xf32>
    %cst_130 = arith.constant 1.250000e-01 : f32
    %319 = vector.broadcast %cst_130 : f32 to vector<1x128xf32>
    %320 = arith.mulf %318, %319 : vector<1x128xf32>
    %321 = vector.broadcast %315 : vector<1x128xf32> to vector<8x128xf32>
    %322 = arith.subf %311, %321 : vector<8x128xf32>
    %323 = arith.mulf %315, %315 : vector<1x128xf32>
    %324 = arith.subf %320, %323 : vector<1x128xf32>
    %cst_131 = arith.constant 9.99999974E-6 : f32
    %325 = vector.broadcast %cst_131 : f32 to vector<1x128xf32>
    %326 = arith.addf %324, %325 : vector<1x128xf32>
    %327 = math.rsqrt %326 : vector<1x128xf32>
    %328 = vector.broadcast %327 : vector<1x128xf32> to vector<8x128xf32>
    %329 = arith.mulf %322, %328 : vector<8x128xf32>
    %330 = vector.extract_strided_slice %306 {offsets = [1, 0, 0], sizes = [1, 8, 1], strides = [1, 1, 1]} : vector<3x8x1xf32> to vector<1x8x1xf32>
    %331 = vector.shape_cast %330 : vector<1x8x1xf32> to vector<8x1xf32>
    %332 = vector.broadcast %331 : vector<8x1xf32> to vector<8x128xf32>
    %333 = arith.mulf %329, %332 : vector<8x128xf32>
    %334 = vector.extract_strided_slice %306 {offsets = [2, 0, 0], sizes = [1, 8, 1], strides = [1, 1, 1]} : vector<3x8x1xf32> to vector<1x8x1xf32>
    %335 = vector.shape_cast %334 : vector<1x8x1xf32> to vector<8x1xf32>
    %336 = vector.broadcast %335 : vector<8x1xf32> to vector<8x128xf32>
    %337 = arith.addf %333, %336 : vector<8x128xf32>
    %cst_132 = arith.constant 0.000000e+00 : f32
    %338 = vector.broadcast %cst_132 : f32 to vector<8x128xf32>
    %339 = arith.maximumf %337, %338 : vector<8x128xf32>
    %340 = arith.addf %339, %302 : vector<8x128xf32>
    %c0_133 = arith.constant 0 : index
    %c0_134 = arith.constant 0 : index
    %341 = vector.load %arg20[%c0_133, %c0_134] : memref<4x8xf32, #tpu.memory_space<vmem>>, vector<4x8xf32>
    %cst_135 = arith.constant dense<0.000000e+00> : vector<4x128xf32>
    %342 = tpu.matmul %341, %340, %cst_135 {dimension_numbers = #tpu.dot_dimension_numbers<[1], [0], [0], [1], [0, 0, 1, 1], [], []>} : vector<4x8xf32>, vector<8x128xf32>, vector<4x128xf32> -> vector<4x128xf32>
    %c0_136 = arith.constant 0 : index
    %c0_137 = arith.constant 0 : index
    %343 = vector.load %arg21[%c0_136, %c0_137] : memref<4x1xf32, #tpu.memory_space<vmem>>, vector<4x1xf32>
    %344 = vector.broadcast %343 : vector<4x1xf32> to vector<4x128xf32>
    %345 = arith.addf %342, %344 : vector<4x128xf32>
    %c0_138 = arith.constant 0 : index
    %c0_139 = arith.constant 0 : index
    %346 = vector.load %arg22[%c0_138, %c0_139] : memref<1x128xf32, #tpu.memory_space<vmem>>, vector<1x128xf32>
    %347 = vector.broadcast %346 : vector<1x128xf32> to vector<4x128xf32>
    %348 = arith.mulf %345, %347 : vector<4x128xf32>
    %cst_140 = arith.constant dense<0.000000e+00> : vector<4xf32>
    %349 = vector.multi_reduction <add>, %348, %cst_140 [1] : vector<4x128xf32> to vector<4xf32>
    %350 = vector.shape_cast %349 : vector<4xf32> to vector<4x1xf32>
    %c0_141 = arith.constant 0 : index
    %c0_142 = arith.constant 0 : index
    %351 = vector.load %arg23[%c0_141, %c0_142] : memref<1x1xf32, #tpu.memory_space<vmem>>, vector<1x1xf32>
    %352 = vector.broadcast %351 : vector<1x1xf32> to vector<4x1xf32>
    %353 = arith.addf %350, %352 : vector<4x1xf32>
    %c0_143 = arith.constant 0 : index
    %c0_144 = arith.constant 0 : index
    %c0_145 = arith.constant 0 : index
    %c0_146 = arith.constant 0 : index
    %354 = vector.load %arg24[%c0_143, %c0_144, %c0_145, %c0_146] : memref<1x1x4x1xf32, #tpu.memory_space<vmem>>, vector<1x1x4x1xf32>
    %355 = vector.shape_cast %354 : vector<1x1x4x1xf32> to vector<4x1xf32>
    %356 = vector.shape_cast %353 : vector<4x1xf32> to vector<1x1x4x1xf32>
    tpu.vector_store %arg24[%c0_143, %c0_144, %c0_145, %c0_146], %356 {strides = array<i32>} : memref<1x1x4x1xf32, #tpu.memory_space<vmem>>, vector<1x1x4x1xf32>,
    return
  }
  func.func @transform_0(%arg0: i32, %arg1: i32) -> (i32, i32, i32, i32) {
    %c0_i32 = arith.constant 0 : i32
    %c0_i32_0 = arith.constant 0 : i32
    %c0_i32_1 = arith.constant 0 : i32
    return %arg0, %arg1, %c0_i32, %c0_i32_0 : i32, i32, i32, i32
  }
  func.func @transform_1(%arg0: i32, %arg1: i32) -> (i32, i32, i32, i32) {
    %c0_i32 = arith.constant 0 : i32
    %c0_i32_0 = arith.constant 0 : i32
    %c0_i32_1 = arith.constant 0 : i32
    return %arg0, %arg1, %c0_i32, %c0_i32_0 : i32, i32, i32, i32
  }
  func.func @transform_2(%arg0: i32, %arg1: i32) -> (i32, i32, i32, i32) {
    %c0_i32 = arith.constant 0 : i32
    %c0_i32_0 = arith.constant 0 : i32
    %c0_i32_1 = arith.constant 0 : i32
    return %arg0, %arg1, %c0_i32, %c0_i32_0 : i32, i32, i32, i32
  }
  func.func @transform_3(%arg0: i32, %arg1: i32) -> (i32, i32, i32) {
    %c0_i32 = arith.constant 0 : i32
    %c0_i32_0 = arith.constant 0 : i32
    %c0_i32_1 = arith.constant 0 : i32
    %c0_i32_2 = arith.constant 0 : i32
    return %c0_i32, %c0_i32_0, %c0_i32_1 : i32, i32, i32
  }
  func.func @transform_4(%arg0: i32, %arg1: i32) -> (i32, i32, i32) {
    %c0_i32 = arith.constant 0 : i32
    %c0_i32_0 = arith.constant 0 : i32
    %c0_i32_1 = arith.constant 0 : i32
    %c0_i32_2 = arith.constant 0 : i32
    return %c0_i32, %c0_i32_0, %c0_i32_1 : i32, i32, i32
  }
  func.func @transform_5(%arg0: i32, %arg1: i32) -> (i32, i32, i32) {
    %c0_i32 = arith.constant 0 : i32
    %c0_i32_0 = arith.constant 0 : i32
    %c0_i32_1 = arith.constant 0 : i32
    %c0_i32_2 = arith.constant 0 : i32
    return %c0_i32, %c0_i32_0, %c0_i32_1 : i32, i32, i32
  }
  func.func @transform_6(%arg0: i32, %arg1: i32) -> (i32, i32, i32) {
    %c0_i32 = arith.constant 0 : i32
    %c0_i32_0 = arith.constant 0 : i32
    %c0_i32_1 = arith.constant 0 : i32
    %c0_i32_2 = arith.constant 0 : i32
    return %c0_i32, %c0_i32_0, %c0_i32_1 : i32, i32, i32
  }
  func.func @transform_7(%arg0: i32, %arg1: i32) -> (i32, i32, i32) {
    %c0_i32 = arith.constant 0 : i32
    %c0_i32_0 = arith.constant 0 : i32
    %c0_i32_1 = arith.constant 0 : i32
    %c0_i32_2 = arith.constant 0 : i32
    return %c0_i32, %c0_i32_0, %c0_i32_1 : i32, i32, i32
  }
  func.func @transform_8(%arg0: i32, %arg1: i32) -> (i32, i32, i32) {
    %c0_i32 = arith.constant 0 : i32
    %c0_i32_0 = arith.constant 0 : i32
    %c0_i32_1 = arith.constant 0 : i32
    %c0_i32_2 = arith.constant 0 : i32
    return %c0_i32, %c0_i32_0, %c0_i32_1 : i32, i32, i32
  }
  func.func @transform_9(%arg0: i32, %arg1: i32) -> (i32, i32) {
    %c0_i32 = arith.constant 0 : i32
    %c0_i32_0 = arith.constant 0 : i32
    %c0_i32_1 = arith.constant 0 : i32
    return %c0_i32, %c0_i32_0 : i32, i32
  }
  func.func @transform_10(%arg0: i32, %arg1: i32) -> (i32, i32) {
    %c0_i32 = arith.constant 0 : i32
    %c0_i32_0 = arith.constant 0 : i32
    %c0_i32_1 = arith.constant 0 : i32
    return %c0_i32, %c0_i32_0 : i32, i32
  }
  func.func @transform_11(%arg0: i32, %arg1: i32) -> (i32, i32) {
    %c0_i32 = arith.constant 0 : i32
    %c0_i32_0 = arith.constant 0 : i32
    %c0_i32_1 = arith.constant 0 : i32
    return %c0_i32, %c0_i32_0 : i32, i32
  }
  func.func @transform_12(%arg0: i32, %arg1: i32) -> (i32, i32, i32) {
    %c0_i32 = arith.constant 0 : i32
    %c0_i32_0 = arith.constant 0 : i32
    %c0_i32_1 = arith.constant 0 : i32
    %c0_i32_2 = arith.constant 0 : i32
    return %c0_i32, %c0_i32_0, %c0_i32_1 : i32, i32, i32
  }
  func.func @transform_13(%arg0: i32, %arg1: i32) -> (i32, i32, i32) {
    %c0_i32 = arith.constant 0 : i32
    %c0_i32_0 = arith.constant 0 : i32
    %c0_i32_1 = arith.constant 0 : i32
    %c0_i32_2 = arith.constant 0 : i32
    return %c0_i32, %c0_i32_0, %c0_i32_1 : i32, i32, i32
  }
  func.func @transform_14(%arg0: i32, %arg1: i32) -> (i32, i32, i32) {
    %c0_i32 = arith.constant 0 : i32
    %c0_i32_0 = arith.constant 0 : i32
    %c0_i32_1 = arith.constant 0 : i32
    %c0_i32_2 = arith.constant 0 : i32
    return %c0_i32, %c0_i32_0, %c0_i32_1 : i32, i32, i32
  }
  func.func @transform_15(%arg0: i32, %arg1: i32) -> (i32, i32, i32) {
    %c0_i32 = arith.constant 0 : i32
    %c0_i32_0 = arith.constant 0 : i32
    %c0_i32_1 = arith.constant 0 : i32
    %c0_i32_2 = arith.constant 0 : i32
    return %c0_i32, %c0_i32_0, %c0_i32_1 : i32, i32, i32
  }
  func.func @transform_16(%arg0: i32, %arg1: i32) -> (i32, i32, i32) {
    %c0_i32 = arith.constant 0 : i32
    %c0_i32_0 = arith.constant 0 : i32
    %c0_i32_1 = arith.constant 0 : i32
    %c0_i32_2 = arith.constant 0 : i32
    return %c0_i32, %c0_i32_0, %c0_i32_1 : i32, i32, i32
  }
  func.func @transform_17(%arg0: i32, %arg1: i32) -> (i32, i32, i32, i32) {
    %c0_i32 = arith.constant 0 : i32
    %c0_i32_0 = arith.constant 0 : i32
    %c0_i32_1 = arith.constant 0 : i32
    %c0_i32_2 = arith.constant 0 : i32
    %c0_i32_3 = arith.constant 0 : i32
    return %c0_i32, %c0_i32_0, %c0_i32_1, %c0_i32_2 : i32, i32, i32, i32
  }
  func.func @transform_18(%arg0: i32, %arg1: i32) -> (i32, i32) {
    %c0_i32 = arith.constant 0 : i32
    %c0_i32_0 = arith.constant 0 : i32
    %c0_i32_1 = arith.constant 0 : i32
    return %c0_i32, %c0_i32_0 : i32, i32
  }
  func.func @transform_19(%arg0: i32, %arg1: i32) -> (i32, i32) {
    %c0_i32 = arith.constant 0 : i32
    %c0_i32_0 = arith.constant 0 : i32
    %c0_i32_1 = arith.constant 0 : i32
    return %c0_i32, %c0_i32_0 : i32, i32
  }
  func.func @transform_20(%arg0: i32, %arg1: i32) -> (i32, i32) {
    %c0_i32 = arith.constant 0 : i32
    %c0_i32_0 = arith.constant 0 : i32
    %c0_i32_1 = arith.constant 0 : i32
    return %c0_i32, %c0_i32_0 : i32, i32
  }
  func.func @transform_21(%arg0: i32, %arg1: i32) -> (i32, i32) {
    %c0_i32 = arith.constant 0 : i32
    %c0_i32_0 = arith.constant 0 : i32
    %c0_i32_1 = arith.constant 0 : i32
    return %c0_i32, %c0_i32_0 : i32, i32
  }
  func.func @transform_22(%arg0: i32, %arg1: i32) -> (i32, i32, i32, i32) {
    %c0_i32 = arith.constant 0 : i32
    %c0_i32_0 = arith.constant 0 : i32
    %c0_i32_1 = arith.constant 0 : i32
    return %arg0, %arg1, %c0_i32, %c0_i32_0 : i32, i32, i32, i32
  }
}

</mosaic_0001>

<llo_original>
// kernel: fedci_forward.1
$region0: #{fedci_forward.1}
  #allocation0 [shape = 'u32[]', space=smem, size = 0x4, offset = 0x4, fixed_abs, tag = 'smem constant byte address 0x4 - core index']
  #allocation1 [shape = 'u32[144,128]{1,0:T(1,128)}', space=vmem, size = 0x12000, scoped, tag = 'internal scratch']
  #allocation2 [shape = 'f32[1,1]{1,0:T(1,128)S(1)}', space=vmem, size = 0x200, scoped, tag = 'scoped memory for fedci_forward.1']
  %s0 = inlined_call_operand.vmem [shape: f32[2,4,8,16], index: 0, kind: input, shape index: {}]
  %s1 = inlined_call_operand.vmem [shape: f32[2,4,1,16], index: 1, kind: input, shape index: {}]
  %s2 = inlined_call_operand.vmem [shape: f32[2,4,8,1], index: 2, kind: input, shape index: {}]
  %s3 = inlined_call_operand.vmem [shape: f32[1,16,16], index: 3, kind: input, shape index: {}]
  %s4 = inlined_call_operand.vmem [shape: f32[1,3,16], index: 4, kind: input, shape index: {}]
  %s5 = inlined_call_operand.vmem [shape: f32[1,16,16], index: 5, kind: input, shape index: {}]
  %s6 = inlined_call_operand.vmem [shape: f32[1,3,16], index: 6, kind: input, shape index: {}]
  %s7 = inlined_call_operand.vmem [shape: f32[1,32,32], index: 7, kind: input, shape index: {}]
  %s8 = inlined_call_operand.vmem [shape: f32[1,3,32], index: 8, kind: input, shape index: {}]
  %s9 = inlined_call_operand.vmem [shape: f32[1,96], index: 9, kind: input, shape index: {}]
  %s10 = inlined_call_operand.vmem [shape: f32[1,96], index: 10, kind: input, shape index: {}]
  %s11 = inlined_call_operand.vmem [shape: f32[1,96], index: 11, kind: input, shape index: {}]
  %s12 = inlined_call_operand.vmem [shape: f32[1,96,96], index: 12, kind: input, shape index: {}]
  %s13 = inlined_call_operand.vmem [shape: f32[1,3,96], index: 13, kind: input, shape index: {}]
  %s14 = inlined_call_operand.vmem [shape: f32[3,128,128], index: 14, kind: input, shape index: {}]
  %s15 = inlined_call_operand.vmem [shape: f32[3,3,128], index: 15, kind: input, shape index: {}]
  %s16 = inlined_call_operand.vmem [shape: f32[2,8,8], index: 16, kind: input, shape index: {}]
  %s17 = inlined_call_operand.vmem [shape: f32[2,3,8,1], index: 17, kind: input, shape index: {}]
  %s18 = inlined_call_operand.vmem [shape: f32[4,8], index: 18, kind: input, shape index: {}]
  %s19 = inlined_call_operand.vmem [shape: f32[4,1], index: 19, kind: input, shape index: {}]
  %s20 = inlined_call_operand.vmem [shape: f32[1,128], index: 20, kind: input, shape index: {}]
  %s21 = inlined_call_operand.<no memory space> [shape: f32[1,1], index: 21, kind: input, shape index: {}]
  %s22 = inlined_call_operand.vmem [shape: f32[2,4,4,1], index: 22, kind: output, shape index: {}]
  %s23 = sld [smem:[#allocation0]]
  $region121: #{fedci_forward.1} parent=0
    _
  %s25 = ssub.s32 1, %s23
  %s26 = scalar_select 0, %s25, %s23
  %v27 = vstv %s21
  %28 = vst [vmem:[#allocation2] sm:$0x1] %v27
  loop: start=0, step=1, limit=10
  $region2: #{fedci_forward.1} parent=0 // loop_pre_header
    _
  $region3: #{fedci_forward.1} parent=0 // loop_header
    %s30 = sphi 0, %s34
    %p31 = scmp.ge.s32.totalorder %s30, 10
    %s37 = sphi 0, %s49
    %s38 = sphi 0, %s45
    %s39 = sphi 0, %s37
    %s40 = sphi 0, %s38
    %s41 = sphi 0, %s39
    %s42 = sphi 0, %s40
    %s54 = sphi 0, %s56
    %s57 = sphi 0, %s54
    %s58 = sphi 0, %s57
    %s74 = sphi 0, %s58
    %s82 = sphi 0, %s84
    %s85 = sphi 0, %s82
    %s86 = sphi 0, %s85
    %s102 = sphi 0, %s86
    %s110 = sphi 0, %s112
    %s113 = sphi 0, %s110
    %s114 = sphi 0, %s113
    %s130 = sphi 0, %s114
    %s134 = sphi 0, %s134
    %s136 = sphi 0, %s134
    %s137 = sphi 0, %s136
    %s151 = sphi 0, %s137
    %s155 = sphi 0, %s155
    %s157 = sphi 0, %s155
    %s158 = sphi 0, %s157
    %s172 = sphi 0, %s158
    %s176 = sphi 0, %s176
    %s178 = sphi 0, %s176
    %s179 = sphi 0, %s178
    %s193 = sphi 0, %s179
    %s197 = sphi 0, %s197
    %s199 = sphi 0, %s197
    %s200 = sphi 0, %s199
    %s214 = sphi 0, %s200
    %s218 = sphi 0, %s218
    %s220 = sphi 0, %s218
    %s221 = sphi 0, %s220
    %s235 = sphi 0, %s221
    %s239 = sphi 0, %s239
    %s241 = sphi 0, %s239
    %s242 = sphi 0, %s241
    %s256 = sphi 0, %s242
    %s260 = sphi 0, %s260
    %s262 = sphi 0, %s260
    %s263 = sphi 0, %s262
    %s277 = sphi 0, %s263
    %s281 = sphi 0, %s281
    %s283 = sphi 0, %s281
    %s284 = sphi 0, %s283
    %s298 = sphi 0, %s284
    %s302 = sphi 0, %s302
    %s304 = sphi 0, %s302
    %s305 = sphi 0, %s304
    %s319 = sphi 0, %s305
    %s323 = sphi 0, %s323
    %s325 = sphi 0, %s323
    %s326 = sphi 0, %s325
    %s340 = sphi 0, %s326
    %s344 = sphi 0, %s344
    %s346 = sphi 0, %s344
    %s347 = sphi 0, %s346
    %s361 = sphi 0, %s347
    %s365 = sphi 0, %s365
    %s367 = sphi 0, %s365
    %s368 = sphi 0, %s367
    %s382 = sphi 0, %s368
    %s386 = sphi 0, %s386
    %s388 = sphi 0, %s386
    %s389 = sphi 0, %s388
    %s403 = sphi 0, %s389
    %s407 = sphi 0, %s407
    %s409 = sphi 0, %s407
    %s410 = sphi 0, %s409
    %s424 = sphi 0, %s410
    %s428 = sphi 0, %s428
    %s430 = sphi 0, %s428
    %s431 = sphi 0, %s430
    %s445 = sphi 0, %s431
    %s449 = sphi 0, %s449
    %s451 = sphi 0, %s449
    %s452 = sphi 0, %s451
    %s466 = sphi 0, %s452
    %s470 = sphi 0, %s470
    %s472 = sphi 0, %s470
    %s473 = sphi 0, %s472
    %s487 = sphi 0, %s473
    %s491 = sphi 0, %s491
    %s493 = sphi 0, %s491
    %s494 = sphi 0, %s493
    %s508 = sphi 0, %s494
    %s512 = sphi 0, %s512
    %s514 = sphi 0, %s512
    %s515 = sphi 0, %s514
    %s529 = sphi 0, %s515
    %s537 = sphi 0, %s539
    %s540 = sphi 0, %s537
    %s541 = sphi 0, %s540
    %s557 = sphi 0, %s541
  $region4: #{fedci_forward.1} parent=0 // loop_header_branch
    %33 = sbr.rel (%p31) target = $region8
  $region5: #{fedci_forward.1} parent=0 // loop_body
    %s35 = ssub.s32 %s30, 1
    %s36 = ssub.s32 %s30, 2
    %s43 = sadd.s32 1, %s38
    %p44 = scmp.ge.s32.totalorder %s43, 4
    %s45 = scalar_select %p44, 0, %s43
    %s46 = sadd.s32 1, %s37
    %s47 = scalar_select %p44, %s46, %s37
    %p48 = scmp.ge.s32.totalorder %s47, 2
    %s49 = scalar_select %p48, 0, %s47
    %s50 = ssub.s32 %s37, %s49
    %s51 = ssub.s32 %s38, %s45
    %s52 = sor.u32 %s50, %s51
    %p53 = scmp.eq.s32.totalorder %s52, 0
    %s55 = sadd.s32 %s54, 1
    %s56 = scalar_select %p53, %s54, %s55
    %p59 = pneg %p53
    %p60 = scmp.eq.s32.totalorder %s30, 7
    %p61 = por %p59, %p60
    %p62 = scmp.ne.s32.totalorder %s54, %s57
    %p63 = scmp.eq.s32.totalorder %s30, 0
    %p64 = por %p62, %p63
    %p65 = scmp.ne.s32.totalorder %s54, %s57
    %p66 = scmp.eq.s32.totalorder %s35, 7
    %p67 = por %p65, %p66
    %p68 = scmp.ne.s32.totalorder %s57, %s58
    %p69 = scmp.eq.s32.totalorder %s35, 0
    %p70 = por %p68, %p69
    %p71 = scmp.ne.s32.totalorder %s57, %s58
    %p72 = scmp.eq.s32.totalorder %s36, 7
    %p73 = por %p71, %p72
    %p75 = scmp.ne.s32.totalorder %s58, %s74
    %p76 = scmp.eq.s32.totalorder %s36, 0
    %p77 = por %p75, %p76
    %s78 = ssub.s32 %s37, %s49
    %s79 = ssub.s32 %s38, %s45
    %s80 = sor.u32 %s78, %s79
    %p81 = scmp.eq.s32.totalorder %s80, 0
    %s83 = sadd.s32 %s82, 1
    %s84 = scalar_select %p81, %s82, %s83
    %p87 = pneg %p81
    %p88 = scmp.eq.s32.totalorder %s30, 7
    %p89 = por %p87, %p88
    %p90 = scmp.ne.s32.totalorder %s82, %s85
    %p91 = scmp.eq.s32.totalorder %s30, 0
    %p92 = por %p90, %p91
    %p93 = scmp.ne.s32.totalorder %s82, %s85
    %p94 = scmp.eq.s32.totalorder %s35, 7
    %p95 = por %p93, %p94
    %p96 = scmp.ne.s32.totalorder %s85, %s86
    %p97 = scmp.eq.s32.totalorder %s35, 0
    %p98 = por %p96, %p97
    %p99 = scmp.ne.s32.totalorder %s85, %s86
    %p100 = scmp.eq.s32.totalorder %s36, 7
    %p101 = por %p99, %p100
    %p103 = scmp.ne.s32.totalorder %s86, %s102
    %p104 = scmp.eq.s32.totalorder %s36, 0
    %p105 = por %p103, %p104
    %s106 = ssub.s32 %s37, %s49
    %s107 = ssub.s32 %s38, %s45
    %s108 = sor.u32 %s106, %s107
    %p109 = scmp.eq.s32.totalorder %s108, 0
    %s111 = sadd.s32 %s110, 1
    %s112 = scalar_select %p109, %s110, %s111
    %p115 = pneg %p109
    %p116 = scmp.eq.s32.totalorder %s30, 7
    %p117 = por %p115, %p116
    %p118 = scmp.ne.s32.totalorder %s110, %s113
    %p119 = scmp.eq.s32.totalorder %s30, 0
    %p120 = por %p118, %p119
    %p121 = scmp.ne.s32.totalorder %s110, %s113
    %p122 = scmp.eq.s32.totalorder %s35, 7
    %p123 = por %p121, %p122
    %p124 = scmp.ne.s32.totalorder %s113, %s114
    %p125 = scmp.eq.s32.totalorder %s35, 0
    %p126 = por %p124, %p125
    %p127 = scmp.ne.s32.totalorder %s113, %s114
    %p128 = scmp.eq.s32.totalorder %s36, 7
    %p129 = por %p127, %p128
    %p131 = scmp.ne.s32.totalorder %s114, %s130
    %p132 = scmp.eq.s32.totalorder %s36, 0
    %p133 = por %p131, %p132
    %s135 = sadd.s32 %s134, 1
    %p138 = scmp.eq.s32.totalorder %s30, 7
    %p139 = scmp.ne.s32.totalorder %s134, %s136
    %p140 = scmp.eq.s32.totalorder %s30, 0
    %p141 = por %p139, %p140
    %p142 = scmp.ne.s32.totalorder %s134, %s136
    %p143 = scmp.eq.s32.totalorder %s35, 7
    %p144 = por %p142, %p143
    %p145 = scmp.ne.s32.totalorder %s136, %s137
    %p146 = scmp.eq.s32.totalorder %s35, 0
    %p147 = por %p145, %p146
    %p148 = scmp.ne.s32.totalorder %s136, %s137
    %p149 = scmp.eq.s32.totalorder %s36, 7
    %p150 = por %p148, %p149
    %p152 = scmp.ne.s32.totalorder %s137, %s151
    %p153 = scmp.eq.s32.totalorder %s36, 0
    %p154 = por %p152, %p153
    %s156 = sadd.s32 %s155, 1
    %p159 = scmp.eq.s32.totalorder %s30, 7
    %p160 = scmp.ne.s32.totalorder %s155, %s157
    %p161 = scmp.eq.s32.totalorder %s30, 0
    %p162 = por %p160, %p161
    %p163 = scmp.ne.s32.totalorder %s155, %s157
    %p164 = scmp.eq.s32.totalorder %s35, 7
    %p165 = por %p163, %p164
    %p166 = scmp.ne.s32.totalorder %s157, %s158
    %p167 = scmp.eq.s32.totalorder %s35, 0
    %p168 = por %p166, %p167
    %p169 = scmp.ne.s32.totalorder %s157, %s158
    %p170 = scmp.eq.s32.totalorder %s36, 7
    %p171 = por %p169, %p170
    %p173 = scmp.ne.s32.totalorder %s158, %s172
    %p174 = scmp.eq.s32.totalorder %s36, 0
    %p175 = por %p173, %p174
    %s177 = sadd.s32 %s176, 1
    %p180 = scmp.eq.s32.totalorder %s30, 7
    %p181 = scmp.ne.s32.totalorder %s176, %s178
    %p182 = scmp.eq.s32.totalorder %s30, 0
    %p183 = por %p181, %p182
    %p184 = scmp.ne.s32.totalorder %s176, %s178
    %p185 = scmp.eq.s32.totalorder %s35, 7
    %p186 = por %p184, %p185
    %p187 = scmp.ne.s32.totalorder %s178, %s179
    %p188 = scmp.eq.s32.totalorder %s35, 0
    %p189 = por %p187, %p188
    %p190 = scmp.ne.s32.totalorder %s178, %s179
    %p191 = scmp.eq.s32.totalorder %s36, 7
    %p192 = por %p190, %p191
    %p194 = scmp.ne.s32.totalorder %s179, %s193
    %p195 = scmp.eq.s32.totalorder %s36, 0
    %p196 = por %p194, %p195
    %s198 = sadd.s32 %s197, 1
    %p201 = scmp.eq.s32.totalorder %s30, 7
    %p202 = scmp.ne.s32.totalorder %s197, %s199
    %p203 = scmp.eq.s32.totalorder %s30, 0
    %p204 = por %p202, %p203
    %p205 = scmp.ne.s32.totalorder %s197, %s199
    %p206 = scmp.eq.s32.totalorder %s35, 7
    %p207 = por %p205, %p206
    %p208 = scmp.ne.s32.totalorder %s199, %s200
    %p209 = scmp.eq.s32.totalorder %s35, 0
    %p210 = por %p208, %p209
    %p211 = scmp.ne.s32.totalorder %s199, %s200
    %p212 = scmp.eq.s32.totalorder %s36, 7
    %p213 = por %p211, %p212
    %p215 = scmp.ne.s32.totalorder %s200, %s214
    %p216 = scmp.eq.s32.totalorder %s36, 0
    %p217 = por %p215, %p216
    %s219 = sadd.s32 %s218, 1
    %p222 = scmp.eq.s32.totalorder %s30, 7
    %p223 = scmp.ne.s32.totalorder %s218, %s220
    %p224 = scmp.eq.s32.totalorder %s30, 0
    %p225 = por %p223, %p224
    %p226 = scmp.ne.s32.totalorder %s218, %s220
    %p227 = scmp.eq.s32.totalorder %s35, 7
    %p228 = por %p226, %p227
    %p229 = scmp.ne.s32.totalorder %s220, %s221
    %p230 = scmp.eq.s32.totalorder %s35, 0
    %p231 = por %p229, %p230
    %p232 = scmp.ne.s32.totalorder %s220, %s221
    %p233 = scmp.eq.s32.totalorder %s36, 7
    %p234 = por %p232, %p233
    %p236 = scmp.ne.s32.totalorder %s221, %s235
    %p237 = scmp.eq.s32.totalorder %s36, 0
    %p238 = por %p236, %p237
    %s240 = sadd.s32 %s239, 1
    %p243 = scmp.eq.s32.totalorder %s30, 7
    %p244 = scmp.ne.s32.totalorder %s239, %s241
    %p245 = scmp.eq.s32.totalorder %s30, 0
    %p246 = por %p244, %p245
    %p247 = scmp.ne.s32.totalorder %s239, %s241
    %p248 = scmp.eq.s32.totalorder %s35, 7
    %p249 = por %p247, %p248
    %p250 = scmp.ne.s32.totalorder %s241, %s242
    %p251 = scmp.eq.s32.totalorder %s35, 0
    %p252 = por %p250, %p251
    %p253 = scmp.ne.s32.totalorder %s241, %s242
    %p254 = scmp.eq.s32.totalorder %s36, 7
    %p255 = por %p253, %p254
    %p257 = scmp.ne.s32.totalorder %s242, %s256
    %p258 = scmp.eq.s32.totalorder %s36, 0
    %p259 = por %p257, %p258
    %s261 = sadd.s32 %s260, 1
    %p264 = scmp.eq.s32.totalorder %s30, 7
    %p265 = scmp.ne.s32.totalorder %s260, %s262
    %p266 = scmp.eq.s32.totalorder %s30, 0
    %p267 = por %p265, %p266
    %p268 = scmp.ne.s32.totalorder %s260, %s262
    %p269 = scmp.eq.s32.totalorder %s35, 7
    %p270 = por %p268, %p269
    %p271 = scmp.ne.s32.totalorder %s262, %s263
    %p272 = scmp.eq.s32.totalorder %s35, 0
    %p273 = por %p271, %p272
    %p274 = scmp.ne.s32.totalorder %s262, %s263
    %p275 = scmp.eq.s32.totalorder %s36, 7
    %p276 = por %p274, %p275
    %p278 = scmp.ne.s32.totalorder %s263, %s277
    %p279 = scmp.eq.s32.totalorder %s36, 0
    %p280 = por %p278, %p279
    %s282 = sadd.s32 %s281, 1
    %p285 = scmp.eq.s32.totalorder %s30, 7
    %p286 = scmp.ne.s32.totalorder %s281, %s283
    %p287 = scmp.eq.s32.totalorder %s30, 0
    %p288 = por %p286, %p287
    %p289 = scmp.ne.s32.totalorder %s281, %s283
    %p290 = scmp.eq.s32.totalorder %s35, 7
    %p291 = por %p289, %p290
    %p292 = scmp.ne.s32.totalorder %s283, %s284
    %p293 = scmp.eq.s32.totalorder %s35, 0
    %p294 = por %p292, %p293
    %p295 = scmp.ne.s32.totalorder %s283, %s284
    %p296 = scmp.eq.s32.totalorder %s36, 7
    %p297 = por %p295, %p296
    %p299 = scmp.ne.s32.totalorder %s284, %s298
    %p300 = scmp.eq.s32.totalorder %s36, 0
    %p301 = por %p299, %p300
    %s303 = sadd.s32 %s302, 1
    %p306 = scmp.eq.s32.totalorder %s30, 7
    %p307 = scmp.ne.s32.totalorder %s302, %s304
    %p308 = scmp.eq.s32.totalorder %s30, 0
    %p309 = por %p307, %p308
    %p310 = scmp.ne.s32.totalorder %s302, %s304
    %p311 = scmp.eq.s32.totalorder %s35, 7
    %p312 = por %p310, %p311
    %p313 = scmp.ne.s32.totalorder %s304, %s305
    %p314 = scmp.eq.s32.totalorder %s35, 0
    %p315 = por %p313, %p314
    %p316 = scmp.ne.s32.totalorder %s304, %s305
    %p317 = scmp.eq.s32.totalorder %s36, 7
    %p318 = por %p316, %p317
    %p320 = scmp.ne.s32.totalorder %s305, %s319
    %p321 = scmp.eq.s32.totalorder %s36, 0
    %p322 = por %p320, %p321
    %s324 = sadd.s32 %s323, 1
    %p327 = scmp.eq.s32.totalorder %s30, 7
    %p328 = scmp.ne.s32.totalorder %s323, %s325
    %p329 = scmp.eq.s32.totalorder %s30, 0
    %p330 = por %p328, %p329
    %p331 = scmp.ne.s32.totalorder %s323, %s325
    %p332 = scmp.eq.s32.totalorder %s35, 7
    %p333 = por %p331, %p332
    %p334 = scmp.ne.s32.totalorder %s325, %s326
    %p335 = scmp.eq.s32.totalorder %s35, 0
    %p336 = por %p334, %p335
    %p337 = scmp.ne.s32.totalorder %s325, %s326
    %p338 = scmp.eq.s32.totalorder %s36, 7
    %p339 = por %p337, %p338
    %p341 = scmp.ne.s32.totalorder %s326, %s340
    %p342 = scmp.eq.s32.totalorder %s36, 0
    %p343 = por %p341, %p342
    %s345 = sadd.s32 %s344, 1
    %p348 = scmp.eq.s32.totalorder %s30, 7
    %p349 = scmp.ne.s32.totalorder %s344, %s346
    %p350 = scmp.eq.s32.totalorder %s30, 0
    %p351 = por %p349, %p350
    %p352 = scmp.ne.s32.totalorder %s344, %s346
    %p353 = scmp.eq.s32.totalorder %s35, 7
    %p354 = por %p352, %p353
    %p355 = scmp.ne.s32.totalorder %s346, %s347
    %p356 = scmp.eq.s32.totalorder %s35, 0
    %p357 = por %p355, %p356
    %p358 = scmp.ne.s32.totalorder %s346, %s347
    %p359 = scmp.eq.s32.totalorder %s36, 7
    %p360 = por %p358, %p359
    %p362 = scmp.ne.s32.totalorder %s347, %s361
    %p363 = scmp.eq.s32.totalorder %s36, 0
    %p364 = por %p362, %p363
    %s366 = sadd.s32 %s365, 1
    %p369 = scmp.eq.s32.totalorder %s30, 7
    %p370 = scmp.ne.s32.totalorder %s365, %s367
    %p371 = scmp.eq.s32.totalorder %s30, 0
    %p372 = por %p370, %p371
    %p373 = scmp.ne.s32.totalorder %s365, %s367
    %p374 = scmp.eq.s32.totalorder %s35, 7
    %p375 = por %p373, %p374
    %p376 = scmp.ne.s32.totalorder %s367, %s368
    %p377 = scmp.eq.s32.totalorder %s35, 0
    %p378 = por %p376, %p377
    %p379 = scmp.ne.s32.totalorder %s367, %s368
    %p380 = scmp.eq.s32.totalorder %s36, 7
    %p381 = por %p379, %p380
    %p383 = scmp.ne.s32.totalorder %s368, %s382
    %p384 = scmp.eq.s32.totalorder %s36, 0
    %p385 = por %p383, %p384
    %s387 = sadd.s32 %s386, 1
    %p390 = scmp.eq.s32.totalorder %s30, 7
    %p391 = scmp.ne.s32.totalorder %s386, %s388
    %p392 = scmp.eq.s32.totalorder %s30, 0
    %p393 = por %p391, %p392
    %p394 = scmp.ne.s32.totalorder %s386, %s388
    %p395 = scmp.eq.s32.totalorder %s35, 7
    %p396 = por %p394, %p395
    %p397 = scmp.ne.s32.totalorder %s388, %s389
    %p398 = scmp.eq.s32.totalorder %s35, 0
    %p399 = por %p397, %p398
    %p400 = scmp.ne.s32.totalorder %s388, %s389
    %p401 = scmp.eq.s32.totalorder %s36, 7
    %p402 = por %p400, %p401
    %p404 = scmp.ne.s32.totalorder %s389, %s403
    %p405 = scmp.eq.s32.totalorder %s36, 0
    %p406 = por %p404, %p405
    %s408 = sadd.s32 %s407, 1
    %p411 = scmp.eq.s32.totalorder %s30, 7
    %p412 = scmp.ne.s32.totalorder %s407, %s409
    %p413 = scmp.eq.s32.totalorder %s30, 0
    %p414 = por %p412, %p413
    %p415 = scmp.ne.s32.totalorder %s407, %s409
    %p416 = scmp.eq.s32.totalorder %s35, 7
    %p417 = por %p415, %p416
    %p418 = scmp.ne.s32.totalorder %s409, %s410
    %p419 = scmp.eq.s32.totalorder %s35, 0
    %p420 = por %p418, %p419
    %p421 = scmp.ne.s32.totalorder %s409, %s410
    %p422 = scmp.eq.s32.totalorder %s36, 7
    %p423 = por %p421, %p422
    %p425 = scmp.ne.s32.totalorder %s410, %s424
    %p426 = scmp.eq.s32.totalorder %s36, 0
    %p427 = por %p425, %p426
    %s429 = sadd.s32 %s428, 1
    %p432 = scmp.eq.s32.totalorder %s30, 7
    %p433 = scmp.ne.s32.totalorder %s428, %s430
    %p434 = scmp.eq.s32.totalorder %s30, 0
    %p435 = por %p433, %p434
    %p436 = scmp.ne.s32.totalorder %s428, %s430
    %p437 = scmp.eq.s32.totalorder %s35, 7
    %p438 = por %p436, %p437
    %p439 = scmp.ne.s32.totalorder %s430, %s431
    %p440 = scmp.eq.s32.totalorder %s35, 0
    %p441 = por %p439, %p440
    %p442 = scmp.ne.s32.totalorder %s430, %s431
    %p443 = scmp.eq.s32.totalorder %s36, 7
    %p444 = por %p442, %p443
    %p446 = scmp.ne.s32.totalorder %s431, %s445
    %p447 = scmp.eq.s32.totalorder %s36, 0
    %p448 = por %p446, %p447
    %s450 = sadd.s32 %s449, 1
    %p453 = scmp.eq.s32.totalorder %s30, 7
    %p454 = scmp.ne.s32.totalorder %s449, %s451
    %p455 = scmp.eq.s32.totalorder %s30, 0
    %p456 = por %p454, %p455
    %p457 = scmp.ne.s32.totalorder %s449, %s451
    %p458 = scmp.eq.s32.totalorder %s35, 7
    %p459 = por %p457, %p458
    %p460 = scmp.ne.s32.totalorder %s451, %s452
    %p461 = scmp.eq.s32.totalorder %s35, 0
    %p462 = por %p460, %p461
    %p463 = scmp.ne.s32.totalorder %s451, %s452
    %p464 = scmp.eq.s32.totalorder %s36, 7
    %p465 = por %p463, %p464
    %p467 = scmp.ne.s32.totalorder %s452, %s466
    %p468 = scmp.eq.s32.totalorder %s36, 0
    %p469 = por %p467, %p468
    %s471 = sadd.s32 %s470, 1
    %p474 = scmp.eq.s32.totalorder %s30, 7
    %p475 = scmp.ne.s32.totalorder %s470, %s472
    %p476 = scmp.eq.s32.totalorder %s30, 0
    %p477 = por %p475, %p476
    %p478 = scmp.ne.s32.totalorder %s470, %s472
    %p479 = scmp.eq.s32.totalorder %s35, 7
    %p480 = por %p478, %p479
    %p481 = scmp.ne.s32.totalorder %s472, %s473
    %p482 = scmp.eq.s32.totalorder %s35, 0
    %p483 = por %p481, %p482
    %p484 = scmp.ne.s32.totalorder %s472, %s473
    %p485 = scmp.eq.s32.totalorder %s36, 7
    %p486 = por %p484, %p485
    %p488 = scmp.ne.s32.totalorder %s473, %s487
    %p489 = scmp.eq.s32.totalorder %s36, 0
    %p490 = por %p488, %p489
    %s492 = sadd.s32 %s491, 1
    %p495 = scmp.eq.s32.totalorder %s30, 7
    %p496 = scmp.ne.s32.totalorder %s491, %s493
    %p497 = scmp.eq.s32.totalorder %s30, 0
    %p498 = por %p496, %p497
    %p499 = scmp.ne.s32.totalorder %s491, %s493
    %p500 = scmp.eq.s32.totalorder %s35, 7
    %p501 = por %p499, %p500
    %p502 = scmp.ne.s32.totalorder %s493, %s494
    %p503 = scmp.eq.s32.totalorder %s35, 0
    %p504 = por %p502, %p503
    %p505 = scmp.ne.s32.totalorder %s493, %s494
    %p506 = scmp.eq.s32.totalorder %s36, 7
    %p507 = por %p505, %p506
    %p509 = scmp.ne.s32.totalorder %s494, %s508
    %p510 = scmp.eq.s32.totalorder %s36, 0
    %p511 = por %p509, %p510
    %s513 = sadd.s32 %s512, 1
    %p516 = scmp.eq.s32.totalorder %s30, 7
    %p517 = scmp.ne.s32.totalorder %s512, %s514
    %p518 = scmp.eq.s32.totalorder %s30, 0
    %p519 = por %p517, %p518
    %p520 = scmp.ne.s32.totalorder %s512, %s514
    %p521 = scmp.eq.s32.totalorder %s35, 7
    %p522 = por %p520, %p521
    %p523 = scmp.ne.s32.totalorder %s514, %s515
    %p524 = scmp.eq.s32.totalorder %s35, 0
    %p525 = por %p523, %p524
    %p526 = scmp.ne.s32.totalorder %s514, %s515
    %p527 = scmp.eq.s32.totalorder %s36, 7
    %p528 = por %p526, %p527
    %p530 = scmp.ne.s32.totalorder %s515, %s529
    %p531 = scmp.eq.s32.totalorder %s36, 0
    %p532 = por %p530, %p531
    %s533 = ssub.s32 %s37, %s49
    %s534 = ssub.s32 %s38, %s45
    %s535 = sor.u32 %s533, %s534
    %p536 = scmp.eq.s32.totalorder %s535, 0
    %s538 = sadd.s32 %s537, 1
    %s539 = scalar_select %p536, %s537, %s538
    %p542 = pneg %p536
    %p543 = scmp.eq.s32.totalorder %s30, 7
    %p544 = por %p542, %p543
    %p545 = scmp.ne.s32.totalorder %s537, %s540
    %p546 = scmp.eq.s32.totalorder %s30, 0
    %p547 = por %p545, %p546
    %p548 = scmp.ne.s32.totalorder %s537, %s540
    %p549 = scmp.eq.s32.totalorder %s35, 7
    %p550 = por %p548, %p549
    %p551 = scmp.ne.s32.totalorder %s540, %s541
    %p552 = scmp.eq.s32.totalorder %s35, 0
    %p553 = por %p551, %p552
    %p554 = scmp.ne.s32.totalorder %s540, %s541
    %p555 = scmp.eq.s32.totalorder %s36, 7
    %p556 = por %p554, %p555
    %p558 = scmp.ne.s32.totalorder %s541, %s557
    %p559 = scmp.eq.s32.totalorder %s36, 0
    %p560 = por %p558, %p559
    %p561 = scmp.le.s32.totalorder 1, %s30
    %p562 = scmp.lt.s32.totalorder %s30, 9
    %p563 = pnand %p561, %p562
    %p564 = pneg %p563
    // Predicated region
    $region9: #{fedci_forward.1} parent=5 // pred_check
      _
    $region10: #{fedci_forward.1} parent=5 // pred_check_branch
      %566 = sbr.rel (%p563) target = $region12
    $region11: #{fedci_forward.1} parent=5 // pred_region
      %s567 = ssub.s32 %s30, 1
      // Predicated region
      $region13: #{fedci_forward.1} parent=11 // pred_check
        %p568 = pneg %p147
      $region14: #{fedci_forward.1} parent=11 // pred_check_branch
        %570 = sbr.rel (%p568) target = $region16
      $region15: #{fedci_forward.1} parent=11 // pred_region
        _
      $region16: #{fedci_forward.1} parent=11 // pred_fallthru
        _
      // Predicated region
      $region17: #{fedci_forward.1} parent=11 // pred_check
        %p571 = pneg %p168
      $region18: #{fedci_forward.1} parent=11 // pred_check_branch
        %573 = sbr.rel (%p571) target = $region20
      $region19: #{fedci_forward.1} parent=11 // pred_region
        _
      $region20: #{fedci_forward.1} parent=11 // pred_fallthru
        _
      // Predicated region
      $region21: #{fedci_forward.1} parent=11 // pred_check
        %p574 = pneg %p189
      $region22: #{fedci_forward.1} parent=11 // pred_check_branch
        %576 = sbr.rel (%p574) target = $region24
      $region23: #{fedci_forward.1} parent=11 // pred_region
        _
      $region24: #{fedci_forward.1} parent=11 // pred_fallthru
        _
      // Predicated region
      $region25: #{fedci_forward.1} parent=11 // pred_check
        %p577 = pneg %p210
      $region26: #{fedci_forward.1} parent=11 // pred_check_branch
        %579 = sbr.rel (%p577) target = $region28
      $region27: #{fedci_forward.1} parent=11 // pred_region
        _
      $region28: #{fedci_forward.1} parent=11 // pred_fallthru
        _
      // Predicated region
      $region29: #{fedci_forward.1} parent=11 // pred_check
        %p580 = pneg %p231
      $region30: #{fedci_forward.1} parent=11 // pred_check_branch
        %582 = sbr.rel (%p580) target = $region32
      $region31: #{fedci_forward.1} parent=11 // pred_region
        _
      $region32: #{fedci_forward.1} parent=11 // pred_fallthru
        _
      // Predicated region
      $region33: #{fedci_forward.1} parent=11 // pred_check
        %p583 = pneg %p252
      $region34: #{fedci_forward.1} parent=11 // pred_check_branch
        %585 = sbr.rel (%p583) target = $region36
      $region35: #{fedci_forward.1} parent=11 // pred_region
        _
      $region36: #{fedci_forward.1} parent=11 // pred_fallthru
        _
      // Predicated region
      $region37: #{fedci_forward.1} parent=11 // pred_check
        %p586 = pneg %p273
      $region38: #{fedci_forward.1} parent=11 // pred_check_branch
        %588 = sbr.rel (%p586) target = $region40
      $region39: #{fedci_forward.1} parent=11 // pred_region
        _
      $region40: #{fedci_forward.1} parent=11 // pred_fallthru
        _
      // Predicated region
      $region41: #{fedci_forward.1} parent=11 // pred_check
        %p589 = pneg %p294
      $region42: #{fedci_forward.1} parent=11 // pred_check_branch
        %591 = sbr.rel (%p589) target = $region44
      $region43: #{fedci_forward.1} parent=11 // pred_region
        _
      $region44: #{fedci_forward.1} parent=11 // pred_fallthru
        _
      // Predicated region
      $region45: #{fedci_forward.1} parent=11 // pred_check
        %p592 = pneg %p315
      $region46: #{fedci_forward.1} parent=11 // pred_check_branch
        %594 = sbr.rel (%p592) target = $region48
      $region47: #{fedci_forward.1} parent=11 // pred_region
        _
      $region48: #{fedci_forward.1} parent=11 // pred_fallthru
        _
      // Predicated region
      $region49: #{fedci_forward.1} parent=11 // pred_check
        %p595 = pneg %p336
      $region50: #{fedci_forward.1} parent=11 // pred_check_branch
        %597 = sbr.rel (%p595) target = $region52
      $region51: #{fedci_forward.1} parent=11 // pred_region
        _
      $region52: #{fedci_forward.1} parent=11 // pred_fallthru
        _
      // Predicated region
      $region53: #{fedci_forward.1} parent=11 // pred_check
        %p598 = pneg %p357
      $region54: #{fedci_forward.1} parent=11 // pred_check_branch
        %600 = sbr.rel (%p598) target = $region56
      $region55: #{fedci_forward.1} parent=11 // pred_region
        _
      $region56: #{fedci_forward.1} parent=11 // pred_fallthru
        _
      // Predicated region
      $region57: #{fedci_forward.1} parent=11 // pred_check
        %p601 = pneg %p378
      $region58: #{fedci_forward.1} parent=11 // pred_check_branch
        %603 = sbr.rel (%p601) target = $region60
      $region59: #{fedci_forward.1} parent=11 // pred_region
        _
      $region60: #{fedci_forward.1} parent=11 // pred_fallthru
        _
      // Predicated region
      $region61: #{fedci_forward.1} parent=11 // pred_check
        %p604 = pneg %p399
      $region62: #{fedci_forward.1} parent=11 // pred_check_branch
        %606 = sbr.rel (%p604) target = $region64
      $region63: #{fedci_forward.1} parent=11 // pred_region
        _
      $region64: #{fedci_forward.1} parent=11 // pred_fallthru
        _
      // Predicated region
      $region65: #{fedci_forward.1} parent=11 // pred_check
        %p607 = pneg %p420
      $region66: #{fedci_forward.1} parent=11 // pred_check_branch
        %609 = sbr.rel (%p607) target = $region68
      $region67: #{fedci_forward.1} parent=11 // pred_region
        _
      $region68: #{fedci_forward.1} parent=11 // pred_fallthru
        _
      // Predicated region
      $region69: #{fedci_forward.1} parent=11 // pred_check
        %p610 = pneg %p441
      $region70: #{fedci_forward.1} parent=11 // pred_check_branch
        %612 = sbr.rel (%p610) target = $region72
      $region71: #{fedci_forward.1} parent=11 // pred_region
        _
      $region72: #{fedci_forward.1} parent=11 // pred_fallthru
        _
      // Predicated region
      $region73: #{fedci_forward.1} parent=11 // pred_check
        %p613 = pneg %p462
      $region74: #{fedci_forward.1} parent=11 // pred_check_branch
        %615 = sbr.rel (%p613) target = $region76
      $region75: #{fedci_forward.1} parent=11 // pred_region
        _
      $region76: #{fedci_forward.1} parent=11 // pred_fallthru
        _
      // Predicated region
      $region77: #{fedci_forward.1} parent=11 // pred_check
        %p616 = pneg %p483
      $region78: #{fedci_forward.1} parent=11 // pred_check_branch
        %618 = sbr.rel (%p616) target = $region80
      $region79: #{fedci_forward.1} parent=11 // pred_region
        _
      $region80: #{fedci_forward.1} parent=11 // pred_fallthru
        _
      // Predicated region
      $region81: #{fedci_forward.1} parent=11 // pred_check
        %p619 = pneg %p504
      $region82: #{fedci_forward.1} parent=11 // pred_check_branch
        %621 = sbr.rel (%p619) target = $region84
      $region83: #{fedci_forward.1} parent=11 // pred_region
        _
      $region84: #{fedci_forward.1} parent=11 // pred_fallthru
        _
      // Predicated region
      $region85: #{fedci_forward.1} parent=11 // pred_check
        %p622 = pneg %p525
      $region86: #{fedci_forward.1} parent=11 // pred_check_branch
        %624 = sbr.rel (%p622) target = $region88
      $region87: #{fedci_forward.1} parent=11 // pred_region
        _
      $region88: #{fedci_forward.1} parent=11 // pred_fallthru
        _
    $region12: #{fedci_forward.1} parent=5 // pred_fallthru
      _
    %p625 = scmp.lt.s32.totalorder %s30, 8
    // Predicated region
    $region89: #{fedci_forward.1} parent=5 // pred_check
      %p626 = pneg %p625
    $region90: #{fedci_forward.1} parent=5 // pred_check_branch
      %628 = sbr.rel (%p626) target = $region92
    $region91: #{fedci_forward.1} parent=5 // pred_region
      // Predicated region
      $region93: #{fedci_forward.1} parent=91 // pred_check
        %p629 = pneg %p64
      $region94: #{fedci_forward.1} parent=91 // pred_check_branch
        %631 = sbr.rel (%p629) target = $region96
      $region95: #{fedci_forward.1} parent=91 // pred_region
        %p632 = scmp.lt.s32.totalorder %s37, 1
        %s633 = scalar_select %p632, %s37, 1
        %p634 = scmp.lt.s32.totalorder %s38, 3
        %s635 = scalar_select %p634, %s38, 3
        %s636 = smul.addr %s633, 4
        %s637 = sadd.s32 %s635, %s636
        %s638 = smul.addr %s637, 8
        %s639 = scalar_lea.vmem %s0, %s638
      $region96: #{fedci_forward.1} parent=91 // pred_fallthru
        _
      // Predicated region
      $region97: #{fedci_forward.1} parent=91 // pred_check
        %p640 = pneg %p92
      $region98: #{fedci_forward.1} parent=91 // pred_check_branch
        %642 = sbr.rel (%p640) target = $region100
      $region99: #{fedci_forward.1} parent=91 // pred_region
        %p643 = scmp.lt.s32.totalorder %s37, 1
        %s644 = scalar_select %p643, %s37, 1
        %p645 = scmp.lt.s32.totalorder %s38, 3
        %s646 = scalar_select %p645, %s38, 3
        %s647 = smul.addr %s644, 4
        %s648 = sadd.s32 %s646, %s647
        %s649 = scalar_lea.vmem %s1, %s648
      $region100: #{fedci_forward.1} parent=91 // pred_fallthru
        _
      // Predicated region
      $region101: #{fedci_forward.1} parent=91 // pred_check
        %p650 = pneg %p120
      $region102: #{fedci_forward.1} parent=91 // pred_check_branch
        %652 = sbr.rel (%p650) target = $region104
      $region103: #{fedci_forward.1} parent=91 // pred_region
        %p653 = scmp.lt.s32.totalorder %s37, 1
        %s654 = scalar_select %p653, %s37, 1
        %p655 = scmp.lt.s32.totalorder %s38, 3
        %s656 = scalar_select %p655, %s38, 3
        %s657 = smul.addr %s654, 4
        %s658 = sadd.s32 %s656, %s657
        %s659 = smul.addr %s658, 8
        %s660 = scalar_lea.vmem %s2, %s659
      $region104: #{fedci_forward.1} parent=91 // pred_fallthru
        _
    $region92: #{fedci_forward.1} parent=5 // pred_fallthru
      _
    %p661 = scmp.le.s32.totalorder 1, %s30
    %p662 = scmp.lt.s32.totalorder %s30, 9
    %p663 = pnand %p661, %p662
    %p664 = pneg %p663
    // Predicated region
    $region105: #{fedci_forward.1} parent=5 // pred_check
      _
    $region106: #{fedci_forward.1} parent=5 // pred_check_branch
      %666 = sbr.rel (%p663) target = $region108
    $region107: #{fedci_forward.1} parent=5 // pred_region
      %s667 = ssub.s32 %s30, 1
      %p668 = scmp.lt.s32.totalorder %s39, 1
      %s669 = scalar_select %p668, %s39, 1
      %p670 = scmp.lt.s32.totalorder %s40, 3
      %s671 = scalar_select %p670, %s40, 3
      %s672 = smul.addr %s669, 4
      %s673 = sadd.s32 %s671, %s672
      %s674 = smul.addr %s673, 8
      %s675 = scalar_lea.vmem %s0, %s674
      %p676 = pneg %p70
      %p677 = pneg %p67
      %p678 = scmp.lt.s32.totalorder %s39, 1
      %s679 = scalar_select %p678, %s39, 1
      %p680 = scmp.lt.s32.totalorder %s40, 3
      %s681 = scalar_select %p680, %s40, 3
      %s682 = smul.addr %s679, 4
      %s683 = sadd.s32 %s681, %s682
      %s684 = scalar_lea.vmem %s1, %s683
      %p685 = pneg %p98
      %p686 = pneg %p95
      %p687 = scmp.lt.s32.totalorder %s39, 1
      %s688 = scalar_select %p687, %s39, 1
      %p689 = scmp.lt.s32.totalorder %s40, 3
      %s690 = scalar_select %p689, %s40, 3
      %s691 = smul.addr %s688, 4
      %s692 = sadd.s32 %s690, %s691
      %s693 = smul.addr %s692, 8
      %s694 = scalar_lea.vmem %s2, %s693
      %p695 = pneg %p126
      %p696 = pneg %p123
      %p697 = pneg %p147
      %p698 = pneg %p144
      %p699 = pneg %p168
      %p700 = pneg %p165
      %p701 = pneg %p189
      %p702 = pneg %p186
      %p703 = pneg %p210
      %p704 = pneg %p207
      %p705 = pneg %p231
      %p706 = pneg %p228
      %p707 = pneg %p252
      %p708 = pneg %p249
      %p709 = pneg %p273
      %p710 = pneg %p270
      %p711 = pneg %p294
      %p712 = pneg %p291
      %p713 = pneg %p315
      %p714 = pneg %p312
      %p715 = pneg %p336
      %p716 = pneg %p333
      %p717 = pneg %p357
      %p718 = pneg %p354
      %p719 = pneg %p378
      %p720 = pneg %p375
      %p721 = pneg %p399
      %p722 = pneg %p396
      %p723 = pneg %p420
      %p724 = pneg %p417
      %p725 = pneg %p441
      %p726 = pneg %p438
      %p727 = pneg %p462
      %p728 = pneg %p459
      %p729 = pneg %p483
      %p730 = pneg %p480
      %p731 = pneg %p504
      %p732 = pneg %p501
      %p733 = pneg %p525
      %p734 = pneg %p522
      %p735 = pneg %p553
      %p736 = pneg %p550
      %p737 = scmp.lt.s32.totalorder %s39, 1
      %s738 = scalar_select %p737, %s39, 1
      %p739 = scmp.lt.s32.totalorder %s40, 3
      %s740 = scalar_select %p739, %s40, 3
      %s741 = smul.addr %s738, 4
      %s742 = sadd.s32 %s740, %s741
      %s743 = smul.addr %s742, 4
      %s744 = scalar_lea.vmem %s22, %s743
      %p745 = scmp.lt.s32.totalorder %s39, 1
      %s746 = scalar_select %p745, %s39, 1
      %p747 = scmp.lt.s32.totalorder %s40, 3
      %s748 = scalar_select %p747, %s40, 3
      %s749 = smul.addr %s746, 4
      %s750 = sadd.s32 %s748, %s749
      %s751 = smul.addr %s750, 8
      %s752 = scalar_lea.vmem %s0, %s751
      %p753 = scmp.lt.s32.totalorder %s39, 1
      %s754 = scalar_select %p753, %s39, 1
      %p755 = scmp.lt.s32.totalorder %s40, 3
      %s756 = scalar_select %p755, %s40, 3
      %s757 = smul.addr %s754, 4
      %s758 = sadd.s32 %s756, %s757
      %s759 = scalar_lea.vmem %s1, %s758
      %p760 = scmp.lt.s32.totalorder %s39, 1
      %s761 = scalar_select %p760, %s39, 1
      %p762 = scmp.lt.s32.totalorder %s40, 3
      %s763 = scalar_select %p762, %s40, 3
      %s764 = smul.addr %s761, 4
      %s765 = sadd.s32 %s763, %s764
      %s766 = smul.addr %s765, 8
      %s767 = scalar_lea.vmem %s2, %s766
      %p768 = scmp.lt.s32.totalorder %s39, 1
      %s769 = scalar_select %p768, %s39, 1
      %p770 = scmp.lt.s32.totalorder %s40, 3
      %s771 = scalar_select %p770, %s40, 3
      %s772 = smul.addr %s769, 4
      %s773 = sadd.s32 %s771, %s772
      %s774 = smul.addr %s773, 4
      %s775 = scalar_lea.vmem %s22, %s774
      %v776 = vld [vmem:[%s752] sm:$0xff]
      %v777 = vld [vmem:[%s759] sm:$0x1]
      %v778 = vld [vmem:[%s767] sm:$0xff]
      %v779 = vld [vmem:[%s3] sm:$0xff]
      %v780 = vld [vmem:[%s3 + $0x8] sm:$0xff]
      %v781 = vld [vmem:[%s4] sm:$0x7]
      %v782 = vlaneseq
      %v783 = vshrl.u32 %v782, 7
      %v784 = vsub.s32 0, %v783
      %v785 = vrot.slane %v781, %v784
      %vm786 = vcmask 130048
      %v788 = vsel %vm786, %v776, 0
      %790 = vmatprep.subr.mxu0 0.0
      %791 = vmatpush1.msra.mxu0 %v779
      %792 = vmatprep.subr.mxu0 0.0
      %793 = vmatpush1.msra.mxu0 %v780
      %794 = vmatprep.subr.mxu0 0.0
      %795 = vmatpush1.msra.mxu0 0.0
      %796 = vmatprep.subr.mxu0 0.0
      %797 = vmatpush1.msra.mxu0 0.0
      %798 = vmatprep.subr.mxu0 0.0
      %799 = vmatpush1.msra.mxu0 0.0
      %800 = vmatprep.subr.mxu0 0.0
      %801 = vmatpush1.msra.mxu0 0.0
      %802 = vmatprep.subr.mxu0 0.0
      %803 = vmatpush1.msra.mxu0 0.0
      %804 = vmatprep.subr.mxu0 0.0
      %805 = vmatpush1.msra.mxu0 0.0
      %806 = vmatprep.subr.mxu0 0.0
      %807 = vmatpush1.msra.mxu0 0.0
      %808 = vmatprep.subr.mxu0 0.0
      %809 = vmatpush1.msra.mxu0 0.0
      %810 = vmatprep.subr.mxu0 0.0
      %811 = vmatpush1.msra.mxu0 0.0
      %812 = vmatprep.subr.mxu0 0.0
      %813 = vmatpush1.msra.mxu0 0.0
      %814 = vmatprep.subr.mxu0 0.0
      %815 = vmatpush1.msra.mxu0 0.0
      %816 = vmatprep.subr.mxu0 0.0
      %817 = vmatpush1.msra.mxu0 0.0
      %818 = vmatprep.subr.mxu0 0.0
      %819 = vmatpush1.msra.mxu0 0.0
      %820 = vmatprep.subr.mxu0 0.0
      %821 = vmatpush1.msra.mxu0 0.0
      %822 = vmatprep.subr.mxu0 0.0
      %823 = vmatpush1.msra.mxu0 0.0
      %824 = vmatprep.subr.mxu0 0.0
      %825 = vmatpush1.msra.mxu0 0.0
      %826 = vmatprep.subr.mxu0 0.0
      %827 = vmatpush1.msra.mxu0 0.0
      %828 = vmatprep.subr.mxu0 0.0
      %829 = vmatpush1.msra.mxu0 0.0
      %830 = vmatprep.subr.mxu0 0.0
      %831 = vmatpush1.msra.mxu0 0.0
      %832 = vmatprep.subr.mxu0 0.0
      %833 = vmatpush1.msra.mxu0 0.0
      %834 = vmatprep.subr.mxu0 0.0
      %835 = vmatpush1.msra.mxu0 0.0
      %836 = vmatprep.subr.mxu0 0.0
      %837 = vmatpush1.msra.mxu0 0.0
      %838 = vmatprep.subr.mxu0 0.0
      %839 = vmatpush1.msra.mxu0 0.0
      %840 = vmatprep.subr.mxu0 0.0
      %841 = vmatpush1.msra.mxu0 0.0
      %842 = vmatprep.subr.mxu0 0.0
      %843 = vmatpush1.msra.mxu0 0.0
      %844 = vmatprep.subr.mxu0 0.0
      %845 = vmatpush1.msra.mxu0 0.0
      %846 = vmatprep.subr.mxu0 0.0
      %847 = vmatpush1.msra.mxu0 0.0
      %848 = vmatprep.subr.mxu0 0.0
      %849 = vmatpush1.msra.mxu0 0.0
      %850 = vmatprep.subr.mxu0 0.0
      %851 = vmatpush1.msra.mxu0 0.0
      %852 = vmatprep.subr.mxu0 0.0
      %853 = vmatpush1.msra.mxu0 0.0
      %854 = vmatprep.mubr.f32.mxu0 0.0
      %855 = vmatmul.mubr.f32.gmra.mrb[0].mxu0 %v788
      %v856 = vpop.f32.mrb[0].mxu0
      %v857 = vadd.f32 %v785, %v856
      %v858 = vpop.f32.mrb[0].mxu0
      %859 = vdwg.mxu0
      %v860 = vsel %vm786, %v857, 0.0
      %861 = vadd.xlane.f32.xlu0 %v860
      %v862 = vpop.xlane.xlu0 %861
      %v863 = vmul.f32 %v862, 0.0625
      %v864 = vmul.f32 %v857, %v857
      %v865 = vsel %vm786, %v864, 0.0
      %866 = vadd.xlane.f32.xlu0 %v865
      %v867 = vpop.xlane.xlu0 %866
      %v868 = vmul.f32 %v867, 0.0625
      %v869 = vsub.f32 %v857, %v863
      %v870 = vmul.f32 %v863, %v863
      %v871 = vsub.f32 %v868, %v870
      %v872 = vadd.f32 %v871, 1e-05
      %v873 = vrsqrt.pop %v872
      %v874 = vmul.f32 %v869, %v873
      %v875 = vlaneseq
      %v876 = vshrl.u32 %v875, 7
      %v877 = vsub.s32 1, %v876
      %v878 = vrot.slane %v781, %v877
      %v879 = vmul.f32 %v874, %v878
      %v880 = vlaneseq
      %v881 = vshrl.u32 %v880, 7
      %v882 = vsub.s32 2, %v881
      %v883 = vrot.slane %v781, %v882
      %v884 = vadd.f32 %v879, %v883
      %v885 = vmax.f32 %v884, 0.0
      %v886 = vadd.f32 %v885, %v776
      %v888 = vlaneseq
      %v889 = vshrl.u32 %v888, 7
      %v890 = vsub.s32 0, %v889
      %v891 = vrot.slane %v777, %v890
      %v893 = vld [vmem:[%s5] sm:$0xff]
      %v894 = vld [vmem:[%s5 + $0x8] sm:$0xff]
      %v895 = vld [vmem:[%s6] sm:$0x7]
      %v896 = vlaneseq
      %v897 = vshrl.u32 %v896, 7
      %v898 = vsub.s32 0, %v897
      %v899 = vrot.slane %v895, %v898
      %v900 = vsel %vm786, %v891, 0
      %902 = vmatprep.subr.mxu0 0.0
      %903 = vmatpush1.msra.mxu0 %v893
      %904 = vmatprep.subr.mxu0 0.0
      %905 = vmatpush1.msra.mxu0 %v894
      %906 = vmatprep.subr.mxu0 0.0
      %907 = vmatpush1.msra.mxu0 0.0
      %908 = vmatprep.subr.mxu0 0.0
      %909 = vmatpush1.msra.mxu0 0.0
      %910 = vmatprep.subr.mxu0 0.0
      %911 = vmatpush1.msra.mxu0 0.0
      %912 = vmatprep.subr.mxu0 0.0
      %913 = vmatpush1.msra.mxu0 0.0
      %914 = vmatprep.subr.mxu0 0.0
      %915 = vmatpush1.msra.mxu0 0.0
      %916 = vmatprep.subr.mxu0 0.0
      %917 = vmatpush1.msra.mxu0 0.0
      %918 = vmatprep.subr.mxu0 0.0
      %919 = vmatpush1.msra.mxu0 0.0
      %920 = vmatprep.subr.mxu0 0.0
      %921 = vmatpush1.msra.mxu0 0.0
      %922 = vmatprep.subr.mxu0 0.0
      %923 = vmatpush1.msra.mxu0 0.0
      %924 = vmatprep.subr.mxu0 0.0
      %925 = vmatpush1.msra.mxu0 0.0
      %926 = vmatprep.subr.mxu0 0.0
      %927 = vmatpush1.msra.mxu0 0.0
      %928 = vmatprep.subr.mxu0 0.0
      %929 = vmatpush1.msra.mxu0 0.0
      %930 = vmatprep.subr.mxu0 0.0
      %931 = vmatpush1.msra.mxu0 0.0
      %932 = vmatprep.subr.mxu0 0.0
      %933 = vmatpush1.msra.mxu0 0.0
      %934 = vmatprep.subr.mxu0 0.0
      %935 = vmatpush1.msra.mxu0 0.0
      %936 = vmatprep.subr.mxu0 0.0
      %937 = vmatpush1.msra.mxu0 0.0
      %938 = vmatprep.subr.mxu0 0.0
      %939 = vmatpush1.msra.mxu0 0.0
      %940 = vmatprep.subr.mxu0 0.0
      %941 = vmatpush1.msra.mxu0 0.0
      %942 = vmatprep.subr.mxu0 0.0
      %943 = vmatpush1.msra.mxu0 0.0
      %944 = vmatprep.subr.mxu0 0.0
      %945 = vmatpush1.msra.mxu0 0.0
      %946 = vmatprep.subr.mxu0 0.0
      %947 = vmatpush1.msra.mxu0 0.0
      %948 = vmatprep.subr.mxu0 0.0
      %949 = vmatpush1.msra.mxu0 0.0
      %950 = vmatprep.subr.mxu0 0.0
      %951 = vmatpush1.msra.mxu0 0.0
      %952 = vmatprep.subr.mxu0 0.0
      %953 = vmatpush1.msra.mxu0 0.0
      %954 = vmatprep.subr.mxu0 0.0
      %955 = vmatpush1.msra.mxu0 0.0
      %956 = vmatprep.subr.mxu0 0.0
      %957 = vmatpush1.msra.mxu0 0.0
      %958 = vmatprep.subr.mxu0 0.0
      %959 = vmatpush1.msra.mxu0 0.0
      %960 = vmatprep.subr.mxu0 0.0
      %961 = vmatpush1.msra.mxu0 0.0
      %962 = vmatprep.subr.mxu0 0.0
      %963 = vmatpush1.msra.mxu0 0.0
      %964 = vmatprep.subr.mxu0 0.0
      %965 = vmatpush1.msra.mxu0 0.0
      %966 = vmatprep.mubr.f32.mxu0 0.0
      %967 = vmatmul.mubr.f32.gmra.mrb[0].mxu0 %v900
      %v968 = vpop.f32.mrb[0].mxu0
      %v969 = vadd.f32 %v899, %v968
      %v970 = vpop.f32.mrb[0].mxu0
      %971 = vdwg.mxu0
      %v972 = vsel %vm786, %v969, 0.0
      %973 = vadd.xlane.f32.xlu0 %v972
      %v974 = vpop.xlane.xlu0 %973
      %v975 = vmul.f32 %v974, 0.0625
      %v976 = vmul.f32 %v969, %v969
      %v977 = vsel %vm786, %v976, 0.0
      %978 = vadd.xlane.f32.xlu0 %v977
      %v979 = vpop.xlane.xlu0 %978
      %v980 = vmul.f32 %v979, 0.0625
      %v981 = vsub.f32 %v969, %v975
      %v982 = vmul.f32 %v975, %v975
      %v983 = vsub.f32 %v980, %v982
      %v984 = vadd.f32 %v983, 1e-05
      %v985 = vrsqrt.pop %v984
      %v986 = vmul.f32 %v981, %v985
      %v987 = vlaneseq
      %v988 = vshrl.u32 %v987, 7
      %v989 = vsub.s32 1, %v988
      %v990 = vrot.slane %v895, %v989
      %v991 = vmul.f32 %v986, %v990
      %v992 = vlaneseq
      %v993 = vshrl.u32 %v992, 7
      %v994 = vsub.s32 2, %v993
      %v995 = vrot.slane %v895, %v994
      %v996 = vadd.f32 %v991, %v995
      %v997 = vmax.f32 %v996, 0.0
      %v998 = vadd.f32 %v997, %v891
      %1000 = vrot.lane.b32.xlu0 %v886, 16
      %v1001 = vpop.permute.xlu0 %1000
      %v1003 = vsel %vm786, %v998, %v1001
      %v1004 = vld [vmem:[%s7] sm:$0xff]
      %v1005 = vld [vmem:[%s7 + $0x8] sm:$0xff]
      %v1006 = vld [vmem:[%s7 + $0x10] sm:$0xff]
      %v1007 = vld [vmem:[%s7 + $0x18] sm:$0xff]
      %v1008 = vld [vmem:[%s8] sm:$0x7]
      %v1009 = vlaneseq
      %v1010 = vshrl.u32 %v1009, 7
      %v1011 = vsub.s32 0, %v1010
      %v1012 = vrot.slane %v1008, %v1011
      %vm1013 = vcmask 261120
      %v1015 = vsel %vm1013, %v1003, 0
      %1017 = vmatprep.subr.mxu0 0.0
      %1018 = vmatpush1.msra.mxu0 %v1004
      %1019 = vmatprep.subr.mxu0 0.0
      %1020 = vmatpush1.msra.mxu0 %v1005
      %1021 = vmatprep.subr.mxu0 0.0
      %1022 = vmatpush1.msra.mxu0 %v1006
      %1023 = vmatprep.subr.mxu0 0.0
      %1024 = vmatpush1.msra.mxu0 %v1007
      %1025 = vmatprep.subr.mxu0 0.0
      %1026 = vmatpush1.msra.mxu0 0.0
      %1027 = vmatprep.subr.mxu0 0.0
      %1028 = vmatpush1.msra.mxu0 0.0
      %1029 = vmatprep.subr.mxu0 0.0
      %1030 = vmatpush1.msra.mxu0 0.0
      %1031 = vmatprep.subr.mxu0 0.0
      %1032 = vmatpush1.msra.mxu0 0.0
      %1033 = vmatprep.subr.mxu0 0.0
      %1034 = vmatpush1.msra.mxu0 0.0
      %1035 = vmatprep.subr.mxu0 0.0
      %1036 = vmatpush1.msra.mxu0 0.0
      %1037 = vmatprep.subr.mxu0 0.0
      %1038 = vmatpush1.msra.mxu0 0.0
      %1039 = vmatprep.subr.mxu0 0.0
      %1040 = vmatpush1.msra.mxu0 0.0
      %1041 = vmatprep.subr.mxu0 0.0
      %1042 = vmatpush1.msra.mxu0 0.0
      %1043 = vmatprep.subr.mxu0 0.0
      %1044 = vmatpush1.msra.mxu0 0.0
      %1045 = vmatprep.subr.mxu0 0.0
      %1046 = vmatpush1.msra.mxu0 0.0
      %1047 = vmatprep.subr.mxu0 0.0
      %1048 = vmatpush1.msra.mxu0 0.0
      %1049 = vmatprep.subr.mxu0 0.0
      %1050 = vmatpush1.msra.mxu0 0.0
      %1051 = vmatprep.subr.mxu0 0.0
      %1052 = vmatpush1.msra.mxu0 0.0
      %1053 = vmatprep.subr.mxu0 0.0
      %1054 = vmatpush1.msra.mxu0 0.0
      %1055 = vmatprep.subr.mxu0 0.0
      %1056 = vmatpush1.msra.mxu0 0.0
      %1057 = vmatprep.subr.mxu0 0.0
      %1058 = vmatpush1.msra.mxu0 0.0
      %1059 = vmatprep.subr.mxu0 0.0
      %1060 = vmatpush1.msra.mxu0 0.0
      %1061 = vmatprep.subr.mxu0 0.0
      %1062 = vmatpush1.msra.mxu0 0.0
      %1063 = vmatprep.subr.mxu0 0.0
      %1064 = vmatpush1.msra.mxu0 0.0
      %1065 = vmatprep.subr.mxu0 0.0
      %1066 = vmatpush1.msra.mxu0 0.0
      %1067 = vmatprep.subr.mxu0 0.0
      %1068 = vmatpush1.msra.mxu0 0.0
      %1069 = vmatprep.subr.mxu0 0.0
      %1070 = vmatpush1.msra.mxu0 0.0
      %1071 = vmatprep.subr.mxu0 0.0
      %1072 = vmatpush1.msra.mxu0 0.0
      %1073 = vmatprep.subr.mxu0 0.0
      %1074 = vmatpush1.msra.mxu0 0.0
      %1075 = vmatprep.subr.mxu0 0.0
      %1076 = vmatpush1.msra.mxu0 0.0
      %1077 = vmatprep.subr.mxu0 0.0
      %1078 = vmatpush1.msra.mxu0 0.0
      %1079 = vmatprep.subr.mxu0 0.0
      %1080 = vmatpush1.msra.mxu0 0.0
      %1081 = vmatprep.mubr.f32.mxu0 0.0
      %1082 = vmatmul.mubr.f32.gmra.mrb[0].mxu0 %v1015
      %v1083 = vpop.f32.mrb[0].mxu0
      %v1084 = vadd.f32 %v1012, %v1083
      %v1085 = vpop.f32.mrb[0].mxu0
      %1086 = vdwg.mxu0
      %v1087 = vsel %vm1013, %v1084, 0.0
      %1088 = vadd.xlane.f32.xlu0 %v1087
      %v1089 = vpop.xlane.xlu0 %1088
      %v1090 = vmul.f32 %v1089, 0.03125
      %v1091 = vmul.f32 %v1084, %v1084
      %v1092 = vsel %vm1013, %v1091, 0.0
      %1093 = vadd.xlane.f32.xlu0 %v1092
      %v1094 = vpop.xlane.xlu0 %1093
      %v1095 = vmul.f32 %v1094, 0.03125
      %v1096 = vsub.f32 %v1084, %v1090
      %v1097 = vmul.f32 %v1090, %v1090
      %v1098 = vsub.f32 %v1095, %v1097
      %v1099 = vadd.f32 %v1098, 1e-05
      %v1100 = vrsqrt.pop %v1099
      %v1101 = vmul.f32 %v1096, %v1100
      %v1102 = vlaneseq
      %v1103 = vshrl.u32 %v1102, 7
      %v1104 = vsub.s32 1, %v1103
      %v1105 = vrot.slane %v1008, %v1104
      %v1106 = vmul.f32 %v1101, %v1105
      %v1107 = vlaneseq
      %v1108 = vshrl.u32 %v1107, 7
      %v1109 = vsub.s32 2, %v1108
      %v1110 = vrot.slane %v1008, %v1109
      %v1111 = vadd.f32 %v1106, %v1110
      %v1112 = vmax.f32 %v1111, 0.0
      %v1113 = vadd.f32 %v1112, %v1003
      %v1114 = vld [vmem:[%s9] sm:$0x1]
      %1116 = vset.pattern.permute.xlu0 0
      %1117 = vperm.xlu0 %1116, %v778
      %v1118 = vpop.permute.xlu0 %1117
      %v1121 = vlaneseq
      %v1122 = vshrl.u32 %v1121, 7
      %v1123 = vsub.s32 0, %v1122
      %v1124 = vrot.slane %v1114, %v1123
      %v1126 = vmul.f32 %v1118, %v1124
      %v1127 = vld [vmem:[%s10] sm:$0x1]
      %v1129 = vlaneseq
      %v1130 = vshrl.u32 %v1129, 7
      %v1131 = vsub.s32 0, %v1130
      %v1132 = vrot.slane %v1127, %v1131
      %v1134 = vadd.f32 %v1126, %v1132
      %v1135 = vld [vmem:[%s12] sm:$0xff]
      %v1136 = vld [vmem:[%s12 + $0x8] sm:$0xff]
      %v1137 = vld [vmem:[%s12 + $0x10] sm:$0xff]
      %v1138 = vld [vmem:[%s12 + $0x18] sm:$0xff]
      %v1139 = vld [vmem:[%s12 + $0x20] sm:$0xff]
      %v1140 = vld [vmem:[%s12 + $0x28] sm:$0xff]
      %v1141 = vld [vmem:[%s12 + $0x30] sm:$0xff]
      %v1142 = vld [vmem:[%s12 + $0x38] sm:$0xff]
      %v1143 = vld [vmem:[%s12 + $0x40] sm:$0xff]
      %v1144 = vld [vmem:[%s12 + $0x48] sm:$0xff]
      %v1145 = vld [vmem:[%s12 + $0x50] sm:$0xff]
      %v1146 = vld [vmem:[%s12 + $0x58] sm:$0xff]
      %v1147 = vld [vmem:[%s13] sm:$0x7]
      %v1148 = vlaneseq
      %v1149 = vshrl.u32 %v1148, 7
      %v1150 = vsub.s32 0, %v1149
      %v1151 = vrot.slane %v1147, %v1150
      %vm1152 = vcmask 785408
      %v1154 = vsel %vm1152, %v1134, 0
      %1156 = vmatprep.subr.mxu0 0.0
      %1157 = vmatpush1.msra.mxu0 %v1135
      %1158 = vmatprep.subr.mxu0 0.0
      %1159 = vmatpush1.msra.mxu0 %v1136
      %1160 = vmatprep.subr.mxu0 0.0
      %1161 = vmatpush1.msra.mxu0 %v1137
      %1162 = vmatprep.subr.mxu0 0.0
      %1163 = vmatpush1.msra.mxu0 %v1138
      %1164 = vmatprep.subr.mxu0 0.0
      %1165 = vmatpush1.msra.mxu0 %v1139
      %1166 = vmatprep.subr.mxu0 0.0
      %1167 = vmatpush1.msra.mxu0 %v1140
      %1168 = vmatprep.subr.mxu0 0.0
      %1169 = vmatpush1.msra.mxu0 %v1141
      %1170 = vmatprep.subr.mxu0 0.0
      %1171 = vmatpush1.msra.mxu0 %v1142
      %1172 = vmatprep.subr.mxu0 0.0
      %1173 = vmatpush1.msra.mxu0 %v1143
      %1174 = vmatprep.subr.mxu0 0.0
      %1175 = vmatpush1.msra.mxu0 %v1144
      %1176 = vmatprep.subr.mxu0 0.0
      %1177 = vmatpush1.msra.mxu0 %v1145
      %1178 = vmatprep.subr.mxu0 0.0
      %1179 = vmatpush1.msra.mxu0 %v1146
      %1180 = vmatprep.subr.mxu0 0.0
      %1181 = vmatpush1.msra.mxu0 0.0
      %1182 = vmatprep.subr.mxu0 0.0
      %1183 = vmatpush1.msra.mxu0 0.0
      %1184 = vmatprep.subr.mxu0 0.0
      %1185 = vmatpush1.msra.mxu0 0.0
      %1186 = vmatprep.subr.mxu0 0.0
      %1187 = vmatpush1.msra.mxu0 0.0
      %1188 = vmatprep.subr.mxu0 0.0
      %1189 = vmatpush1.msra.mxu0 0.0
      %1190 = vmatprep.subr.mxu0 0.0
      %1191 = vmatpush1.msra.mxu0 0.0
      %1192 = vmatprep.subr.mxu0 0.0
      %1193 = vmatpush1.msra.mxu0 0.0
      %1194 = vmatprep.subr.mxu0 0.0
      %1195 = vmatpush1.msra.mxu0 0.0
      %1196 = vmatprep.subr.mxu0 0.0
      %1197 = vmatpush1.msra.mxu0 0.0
      %1198 = vmatprep.subr.mxu0 0.0
      %1199 = vmatpush1.msra.mxu0 0.0
      %1200 = vmatprep.subr.mxu0 0.0
      %1201 = vmatpush1.msra.mxu0 0.0
      %1202 = vmatprep.subr.mxu0 0.0
      %1203 = vmatpush1.msra.mxu0 0.0
      %1204 = vmatprep.subr.mxu0 0.0
      %1205 = vmatpush1.msra.mxu0 0.0
      %1206 = vmatprep.subr.mxu0 0.0
      %1207 = vmatpush1.msra.mxu0 0.0
      %1208 = vmatprep.subr.mxu0 0.0
      %1209 = vmatpush1.msra.mxu0 0.0
      %1210 = vmatprep.subr.mxu0 0.0
      %1211 = vmatpush1.msra.mxu0 0.0
      %1212 = vmatprep.subr.mxu0 0.0
      %1213 = vmatpush1.msra.mxu0 0.0
      %1214 = vmatprep.subr.mxu0 0.0
      %1215 = vmatpush1.msra.mxu0 0.0
      %1216 = vmatprep.subr.mxu0 0.0
      %1217 = vmatpush1.msra.mxu0 0.0
      %1218 = vmatprep.subr.mxu0 0.0
      %1219 = vmatpush1.msra.mxu0 0.0
      %1220 = vmatprep.mubr.f32.mxu0 0.0
      %1221 = vmatmul.mubr.f32.gmra.mrb[0].mxu0 %v1154
      %v1222 = vpop.f32.mrb[0].mxu0
      %v1223 = vadd.f32 %v1151, %v1222
      %v1224 = vpop.f32.mrb[0].mxu0
      %1225 = vdwg.mxu0
      %v1226 = vsel %vm1152, %v1223, 0.0
      %1227 = vadd.xlane.f32.xlu0 %v1226
      %v1228 = vpop.xlane.xlu0 %1227
      %v1229 = vmul.f32 %v1228, 0.010416667
      %v1230 = vmul.f32 %v1223, %v1223
      %v1231 = vsel %vm1152, %v1230, 0.0
      %1232 = vadd.xlane.f32.xlu0 %v1231
      %v1233 = vpop.xlane.xlu0 %1232
      %v1234 = vmul.f32 %v1233, 0.010416667
      %v1235 = vsub.f32 %v1223, %v1229
      %v1236 = vmul.f32 %v1229, %v1229
      %v1237 = vsub.f32 %v1234, %v1236
      %v1238 = vadd.f32 %v1237, 1e-05
      %v1239 = vrsqrt.pop %v1238
      %v1240 = vmul.f32 %v1235, %v1239
      %v1241 = vlaneseq
      %v1242 = vshrl.u32 %v1241, 7
      %v1243 = vsub.s32 1, %v1242
      %v1244 = vrot.slane %v1147, %v1243
      %v1245 = vmul.f32 %v1240, %v1244
      %v1246 = vlaneseq
      %v1247 = vshrl.u32 %v1246, 7
      %v1248 = vsub.s32 2, %v1247
      %v1249 = vrot.slane %v1147, %v1248
      %v1250 = vadd.f32 %v1245, %v1249
      %v1251 = vmax.f32 %v1250, 0.0
      %v1252 = vadd.f32 %v1251, %v1134
      %v1253 = vld [vmem:[%s11] sm:$0x1]
      %v1255 = vlaneseq
      %v1256 = vshrl.u32 %v1255, 7
      %v1257 = vsub.s32 0, %v1256
      %v1258 = vrot.slane %v1253, %v1257
      %v1260 = vadd.f32 %v1252, %v1258
      %1262 = vrot.lane.b32.xlu0 %v1260, 32
      %v1263 = vpop.permute.xlu0 %1262
      %v1265 = vsel %vm1013, %v1113, %v1263
      %v1266 = vld [vmem:[%s14] sm:$0xff]
      %v1267 = vld [vmem:[%s14 + $0x8] sm:$0xff]
      %v1268 = vld [vmem:[%s14 + $0x10] sm:$0xff]
      %v1269 = vld [vmem:[%s14 + $0x18] sm:$0xff]
      %v1270 = vld [vmem:[%s14 + $0x20] sm:$0xff]
      %v1271 = vld [vmem:[%s14 + $0x28] sm:$0xff]
      %v1272 = vld [vmem:[%s14 + $0x30] sm:$0xff]
      %v1273 = vld [vmem:[%s14 + $0x38] sm:$0xff]
      %v1274 = vld [vmem:[%s14 + $0x40] sm:$0xff]
      %v1275 = vld [vmem:[%s14 + $0x48] sm:$0xff]
      %v1276 = vld [vmem:[%s14 + $0x50] sm:$0xff]
      %v1277 = vld [vmem:[%s14 + $0x58] sm:$0xff]
      %v1278 = vld [vmem:[%s14 + $0x60] sm:$0xff]
      %v1279 = vld [vmem:[%s14 + $0x68] sm:$0xff]
      %v1280 = vld [vmem:[%s14 + $0x70] sm:$0xff]
      %v1281 = vld [vmem:[%s14 + $0x78] sm:$0xff]
      %v1282 = vld [vmem:[%s15] sm:$0x7]
      %v1283 = vlaneseq
      %v1284 = vshrl.u32 %v1283, 7
      %v1285 = vsub.s32 0, %v1284
      %v1286 = vrot.slane %v1282, %v1285
      %1287 = vmatprep.subr.mxu0 0.0
      %1288 = vmatpush1.msra.mxu0 %v1266
      %1289 = vmatprep.subr.mxu0 0.0
      %1290 = vmatpush1.msra.mxu0 %v1267
      %1291 = vmatprep.subr.mxu0 0.0
      %1292 = vmatpush1.msra.mxu0 %v1268
      %1293 = vmatprep.subr.mxu0 0.0
      %1294 = vmatpush1.msra.mxu0 %v1269
      %1295 = vmatprep.subr.mxu0 0.0
      %1296 = vmatpush1.msra.mxu0 %v1270
      %1297 = vmatprep.subr.mxu0 0.0
      %1298 = vmatpush1.msra.mxu0 %v1271
      %1299 = vmatprep.subr.mxu0 0.0
      %1300 = vmatpush1.msra.mxu0 %v1272
      %1301 = vmatprep.subr.mxu0 0.0
      %1302 = vmatpush1.msra.mxu0 %v1273
      %1303 = vmatprep.subr.mxu0 0.0
      %1304 = vmatpush1.msra.mxu0 %v1274
      %1305 = vmatprep.subr.mxu0 0.0
      %1306 = vmatpush1.msra.mxu0 %v1275
      %1307 = vmatprep.subr.mxu0 0.0
      %1308 = vmatpush1.msra.mxu0 %v1276
      %1309 = vmatprep.subr.mxu0 0.0
      %1310 = vmatpush1.msra.mxu0 %v1277
      %1311 = vmatprep.subr.mxu0 0.0
      %1312 = vmatpush1.msra.mxu0 %v1278
      %1313 = vmatprep.subr.mxu0 0.0
      %1314 = vmatpush1.msra.mxu0 %v1279
      %1315 = vmatprep.subr.mxu0 0.0
      %1316 = vmatpush1.msra.mxu0 %v1280
      %1317 = vmatprep.subr.mxu0 0.0
      %1318 = vmatpush1.msra.mxu0 %v1281
      %1319 = vmatprep.subr.mxu0 0.0
      %1320 = vmatpush1.msra.mxu0 0.0
      %1321 = vmatprep.subr.mxu0 0.0
      %1322 = vmatpush1.msra.mxu0 0.0
      %1323 = vmatprep.subr.mxu0 0.0
      %1324 = vmatpush1.msra.mxu0 0.0
      %1325 = vmatprep.subr.mxu0 0.0
      %1326 = vmatpush1.msra.mxu0 0.0
      %1327 = vmatprep.subr.mxu0 0.0
      %1328 = vmatpush1.msra.mxu0 0.0
      %1329 = vmatprep.subr.mxu0 0.0
      %1330 = vmatpush1.msra.mxu0 0.0
      %1331 = vmatprep.subr.mxu0 0.0
      %1332 = vmatpush1.msra.mxu0 0.0
      %1333 = vmatprep.subr.mxu0 0.0
      %1334 = vmatpush1.msra.mxu0 0.0
      %1335 = vmatprep.subr.mxu0 0.0
      %1336 = vmatpush1.msra.mxu0 0.0
      %1337 = vmatprep.subr.mxu0 0.0
      %1338 = vmatpush1.msra.mxu0 0.0
      %1339 = vmatprep.subr.mxu0 0.0
      %1340 = vmatpush1.msra.mxu0 0.0
      %1341 = vmatprep.subr.mxu0 0.0
      %1342 = vmatpush1.msra.mxu0 0.0
      %1343 = vmatprep.subr.mxu0 0.0
      %1344 = vmatpush1.msra.mxu0 0.0
      %1345 = vmatprep.subr.mxu0 0.0
      %1346 = vmatpush1.msra.mxu0 0.0
      %1347 = vmatprep.subr.mxu0 0.0
      %1348 = vmatpush1.msra.mxu0 0.0
      %1349 = vmatprep.subr.mxu0 0.0
      %1350 = vmatpush1.msra.mxu0 0.0
      %1351 = vmatprep.mubr.f32.mxu0 0.0
      %1352 = vmatmul.mubr.f32.gmra.mrb[0].mxu0 %v1265
      %v1353 = vpop.f32.mrb[0].mxu0
      %v1354 = vadd.f32 %v1286, %v1353
      %v1355 = vpop.f32.mrb[0].mxu0
      %1356 = vdwg.mxu0
      %1357 = vadd.xlane.f32.xlu0 %v1354
      %v1358 = vpop.xlane.xlu0 %1357
      %v1359 = vmul.f32 %v1358, 0.0078125
      %v1360 = vmul.f32 %v1354, %v1354
      %1361 = vadd.xlane.f32.xlu0 %v1360
      %v1362 = vpop.xlane.xlu0 %1361
      %v1363 = vmul.f32 %v1362, 0.0078125
      %v1364 = vsub.f32 %v1354, %v1359
      %v1365 = vmul.f32 %v1359, %v1359
      %v1366 = vsub.f32 %v1363, %v1365
      %v1367 = vadd.f32 %v1366, 1e-05
      %v1368 = vrsqrt.pop %v1367
      %v1369 = vmul.f32 %v1364, %v1368
      %v1370 = vlaneseq
      %v1371 = vshrl.u32 %v1370, 7
      %v1372 = vsub.s32 1, %v1371
      %v1373 = vrot.slane %v1282, %v1372
      %v1374 = vmul.f32 %v1369, %v1373
      %v1375 = vlaneseq
      %v1376 = vshrl.u32 %v1375, 7
      %v1377 = vsub.s32 2, %v1376
      %v1378 = vrot.slane %v1282, %v1377
      %v1379 = vadd.f32 %v1374, %v1378
      %v1380 = vmax.f32 %v1379, 0.0
      %v1381 = vadd.f32 %v1380, %v1265
      %s1382 = scalar_lea.vmem %s14, 128
      %v1383 = vld [vmem:[%s1382] sm:$0xff]
      %v1384 = vld [vmem:[%s1382 + $0x8] sm:$0xff]
      %v1385 = vld [vmem:[%s1382 + $0x10] sm:$0xff]
      %v1386 = vld [vmem:[%s1382 + $0x18] sm:$0xff]
      %v1387 = vld [vmem:[%s1382 + $0x20] sm:$0xff]
      %v1388 = vld [vmem:[%s1382 + $0x28] sm:$0xff]
      %v1389 = vld [vmem:[%s1382 + $0x30] sm:$0xff]
      %v1390 = vld [vmem:[%s1382 + $0x38] sm:$0xff]
      %v1391 = vld [vmem:[%s1382 + $0x40] sm:$0xff]
      %v1392 = vld [vmem:[%s1382 + $0x48] sm:$0xff]
      %v1393 = vld [vmem:[%s1382 + $0x50] sm:$0xff]
      %v1394 = vld [vmem:[%s1382 + $0x58] sm:$0xff]
      %v1395 = vld [vmem:[%s1382 + $0x60] sm:$0xff]
      %v1396 = vld [vmem:[%s1382 + $0x68] sm:$0xff]
      %v1397 = vld [vmem:[%s1382 + $0x70] sm:$0xff]
      %v1398 = vld [vmem:[%s1382 + $0x78] sm:$0xff]
      %s1399 = scalar_lea.vmem %s15, 4
      %v1400 = vld [vmem:[%s1399] sm:$0x7]
      %v1401 = vlaneseq
      %v1402 = vshrl.u32 %v1401, 7
      %v1403 = vsub.s32 0, %v1402
      %v1404 = vrot.slane %v1400, %v1403
      %1405 = vmatprep.subr.mxu0 0.0
      %1406 = vmatpush1.msra.mxu0 %v1383
      %1407 = vmatprep.subr.mxu0 0.0
      %1408 = vmatpush1.msra.mxu0 %v1384
      %1409 = vmatprep.subr.mxu0 0.0
      %1410 = vmatpush1.msra.mxu0 %v1385
      %1411 = vmatprep.subr.mxu0 0.0
      %1412 = vmatpush1.msra.mxu0 %v1386
      %1413 = vmatprep.subr.mxu0 0.0
      %1414 = vmatpush1.msra.mxu0 %v1387
      %1415 = vmatprep.subr.mxu0 0.0
      %1416 = vmatpush1.msra.mxu0 %v1388
      %1417 = vmatprep.subr.mxu0 0.0
      %1418 = vmatpush1.msra.mxu0 %v1389
      %1419 = vmatprep.subr.mxu0 0.0
      %1420 = vmatpush1.msra.mxu0 %v1390
      %1421 = vmatprep.subr.mxu0 0.0
      %1422 = vmatpush1.msra.mxu0 %v1391
      %1423 = vmatprep.subr.mxu0 0.0
      %1424 = vmatpush1.msra.mxu0 %v1392
      %1425 = vmatprep.subr.mxu0 0.0
      %1426 = vmatpush1.msra.mxu0 %v1393
      %1427 = vmatprep.subr.mxu0 0.0
      %1428 = vmatpush1.msra.mxu0 %v1394
      %1429 = vmatprep.subr.mxu0 0.0
      %1430 = vmatpush1.msra.mxu0 %v1395
      %1431 = vmatprep.subr.mxu0 0.0
      %1432 = vmatpush1.msra.mxu0 %v1396
      %1433 = vmatprep.subr.mxu0 0.0
      %1434 = vmatpush1.msra.mxu0 %v1397
      %1435 = vmatprep.subr.mxu0 0.0
      %1436 = vmatpush1.msra.mxu0 %v1398
      %1437 = vmatprep.subr.mxu0 0.0
      %1438 = vmatpush1.msra.mxu0 0.0
      %1439 = vmatprep.subr.mxu0 0.0
      %1440 = vmatpush1.msra.mxu0 0.0
      %1441 = vmatprep.subr.mxu0 0.0
      %1442 = vmatpush1.msra.mxu0 0.0
      %1443 = vmatprep.subr.mxu0 0.0
      %1444 = vmatpush1.msra.mxu0 0.0
      %1445 = vmatprep.subr.mxu0 0.0
      %1446 = vmatpush1.msra.mxu0 0.0
      %1447 = vmatprep.subr.mxu0 0.0
      %1448 = vmatpush1.msra.mxu0 0.0
      %1449 = vmatprep.subr.mxu0 0.0
      %1450 = vmatpush1.msra.mxu0 0.0
      %1451 = vmatprep.subr.mxu0 0.0
      %1452 = vmatpush1.msra.mxu0 0.0
      %1453 = vmatprep.subr.mxu0 0.0
      %1454 = vmatpush1.msra.mxu0 0.0
      %1455 = vmatprep.subr.mxu0 0.0
      %1456 = vmatpush1.msra.mxu0 0.0
      %1457 = vmatprep.subr.mxu0 0.0
      %1458 = vmatpush1.msra.mxu0 0.0
      %1459 = vmatprep.subr.mxu0 0.0
      %1460 = vmatpush1.msra.mxu0 0.0
      %1461 = vmatprep.subr.mxu0 0.0
      %1462 = vmatpush1.msra.mxu0 0.0
      %1463 = vmatprep.subr.mxu0 0.0
      %1464 = vmatpush1.msra.mxu0 0.0
      %1465 = vmatprep.subr.mxu0 0.0
      %1466 = vmatpush1.msra.mxu0 0.0
      %1467 = vmatprep.subr.mxu0 0.0
      %1468 = vmatpush1.msra.mxu0 0.0
      %1469 = vmatprep.mubr.f32.mxu0 0.0
      %1470 = vmatmul.mubr.f32.gmra.mrb[0].mxu0 %v1381
      %v1471 = vpop.f32.mrb[0].mxu0
      %v1472 = vadd.f32 %v1404, %v1471
      %v1473 = vpop.f32.mrb[0].mxu0
      %1474 = vdwg.mxu0
      %1475 = vadd.xlane.f32.xlu0 %v1472
      %v1476 = vpop.xlane.xlu0 %1475
      %v1477 = vmul.f32 %v1476, 0.0078125
      %v1478 = vmul.f32 %v1472, %v1472
      %1479 = vadd.xlane.f32.xlu0 %v1478
      %v1480 = vpop.xlane.xlu0 %1479
      %v1481 = vmul.f32 %v1480, 0.0078125
      %v1482 = vsub.f32 %v1472, %v1477
      %v1483 = vmul.f32 %v1477, %v1477
      %v1484 = vsub.f32 %v1481, %v1483
      %v1485 = vadd.f32 %v1484, 1e-05
      %v1486 = vrsqrt.pop %v1485
      %v1487 = vmul.f32 %v1482, %v1486
      %v1488 = vlaneseq
      %v1489 = vshrl.u32 %v1488, 7
      %v1490 = vsub.s32 1, %v1489
      %v1491 = vrot.slane %v1400, %v1490
      %v1492 = vmul.f32 %v1487, %v1491
      %v1493 = vlaneseq
      %v1494 = vshrl.u32 %v1493, 7
      %v1495 = vsub.s32 2, %v1494
      %v1496 = vrot.slane %v1400, %v1495
      %v1497 = vadd.f32 %v1492, %v1496
      %v1498 = vmax.f32 %v1497, 0.0
      %v1499 = vadd.f32 %v1498, %v1381
      %s1500 = scalar_lea.vmem %s14, 256
      %v1501 = vld [vmem:[%s1500] sm:$0xff]
      %v1502 = vld [vmem:[%s1500 + $0x8] sm:$0xff]
      %v1503 = vld [vmem:[%s1500 + $0x10] sm:$0xff]
      %v1504 = vld [vmem:[%s1500 + $0x18] sm:$0xff]
      %v1505 = vld [vmem:[%s1500 + $0x20] sm:$0xff]
      %v1506 = vld [vmem:[%s1500 + $0x28] sm:$0xff]
      %v1507 = vld [vmem:[%s1500 + $0x30] sm:$0xff]
      %v1508 = vld [vmem:[%s1500 + $0x38] sm:$0xff]
      %v1509 = vld [vmem:[%s1500 + $0x40] sm:$0xff]
      %v1510 = vld [vmem:[%s1500 + $0x48] sm:$0xff]
      %v1511 = vld [vmem:[%s1500 + $0x50] sm:$0xff]
      %v1512 = vld [vmem:[%s1500 + $0x58] sm:$0xff]
      %v1513 = vld [vmem:[%s1500 + $0x60] sm:$0xff]
      %v1514 = vld [vmem:[%s1500 + $0x68] sm:$0xff]
      %v1515 = vld [vmem:[%s1500 + $0x70] sm:$0xff]
      %v1516 = vld [vmem:[%s1500 + $0x78] sm:$0xff]
      %s1517 = scalar_lea.vmem %s15, 8
      %v1518 = vld [vmem:[%s1517] sm:$0x7]
      %v1519 = vlaneseq
      %v1520 = vshrl.u32 %v1519, 7
      %v1521 = vsub.s32 0, %v1520
      %v1522 = vrot.slane %v1518, %v1521
      %1523 = vmatprep.subr.mxu0 0.0
      %1524 = vmatpush1.msra.mxu0 %v1501
      %1525 = vmatprep.subr.mxu0 0.0
      %1526 = vmatpush1.msra.mxu0 %v1502
      %1527 = vmatprep.subr.mxu0 0.0
      %1528 = vmatpush1.msra.mxu0 %v1503
      %1529 = vmatprep.subr.mxu0 0.0
      %1530 = vmatpush1.msra.mxu0 %v1504
      %1531 = vmatprep.subr.mxu0 0.0
      %1532 = vmatpush1.msra.mxu0 %v1505
      %1533 = vmatprep.subr.mxu0 0.0
      %1534 = vmatpush1.msra.mxu0 %v1506
      %1535 = vmatprep.subr.mxu0 0.0
      %1536 = vmatpush1.msra.mxu0 %v1507
      %1537 = vmatprep.subr.mxu0 0.0
      %1538 = vmatpush1.msra.mxu0 %v1508
      %1539 = vmatprep.subr.mxu0 0.0
      %1540 = vmatpush1.msra.mxu0 %v1509
      %1541 = vmatprep.subr.mxu0 0.0
      %1542 = vmatpush1.msra.mxu0 %v1510
      %1543 = vmatprep.subr.mxu0 0.0
      %1544 = vmatpush1.msra.mxu0 %v1511
      %1545 = vmatprep.subr.mxu0 0.0
      %1546 = vmatpush1.msra.mxu0 %v1512
      %1547 = vmatprep.subr.mxu0 0.0
      %1548 = vmatpush1.msra.mxu0 %v1513
      %1549 = vmatprep.subr.mxu0 0.0
      %1550 = vmatpush1.msra.mxu0 %v1514
      %1551 = vmatprep.subr.mxu0 0.0
      %1552 = vmatpush1.msra.mxu0 %v1515
      %1553 = vmatprep.subr.mxu0 0.0
      %1554 = vmatpush1.msra.mxu0 %v1516
      %1555 = vmatprep.subr.mxu0 0.0
      %1556 = vmatpush1.msra.mxu0 0.0
      %1557 = vmatprep.subr.mxu0 0.0
      %1558 = vmatpush1.msra.mxu0 0.0
      %1559 = vmatprep.subr.mxu0 0.0
      %1560 = vmatpush1.msra.mxu0 0.0
      %1561 = vmatprep.subr.mxu0 0.0
      %1562 = vmatpush1.msra.mxu0 0.0
      %1563 = vmatprep.subr.mxu0 0.0
      %1564 = vmatpush1.msra.mxu0 0.0
      %1565 = vmatprep.subr.mxu0 0.0
      %1566 = vmatpush1.msra.mxu0 0.0
      %1567 = vmatprep.subr.mxu0 0.0
      %1568 = vmatpush1.msra.mxu0 0.0
      %1569 = vmatprep.subr.mxu0 0.0
      %1570 = vmatpush1.msra.mxu0 0.0
      %1571 = vmatprep.subr.mxu0 0.0
      %1572 = vmatpush1.msra.mxu0 0.0
      %1573 = vmatprep.subr.mxu0 0.0
      %1574 = vmatpush1.msra.mxu0 0.0
      %1575 = vmatprep.subr.mxu0 0.0
      %1576 = vmatpush1.msra.mxu0 0.0
      %1577 = vmatprep.subr.mxu0 0.0
      %1578 = vmatpush1.msra.mxu0 0.0
      %1579 = vmatprep.subr.mxu0 0.0
      %1580 = vmatpush1.msra.mxu0 0.0
      %1581 = vmatprep.subr.mxu0 0.0
      %1582 = vmatpush1.msra.mxu0 0.0
      %1583 = vmatprep.subr.mxu0 0.0
      %1584 = vmatpush1.msra.mxu0 0.0
      %1585 = vmatprep.subr.mxu0 0.0
      %1586 = vmatpush1.msra.mxu0 0.0
      %1587 = vmatprep.mubr.f32.mxu0 0.0
      %1588 = vmatmul.mubr.f32.gmra.mrb[0].mxu0 %v1499
      %v1589 = vpop.f32.mrb[0].mxu0
      %v1590 = vadd.f32 %v1522, %v1589
      %v1591 = vpop.f32.mrb[0].mxu0
      %1592 = vdwg.mxu0
      %1593 = vadd.xlane.f32.xlu0 %v1590
      %v1594 = vpop.xlane.xlu0 %1593
      %v1595 = vmul.f32 %v1594, 0.0078125
      %v1596 = vmul.f32 %v1590, %v1590
      %1597 = vadd.xlane.f32.xlu0 %v1596
      %v1598 = vpop.xlane.xlu0 %1597
      %v1599 = vmul.f32 %v1598, 0.0078125
      %v1600 = vsub.f32 %v1590, %v1595
      %v1601 = vmul.f32 %v1595, %v1595
      %v1602 = vsub.f32 %v1599, %v1601
      %v1603 = vadd.f32 %v1602, 1e-05
      %v1604 = vrsqrt.pop %v1603
      %v1605 = vmul.f32 %v1600, %v1604
      %v1606 = vlaneseq
      %v1607 = vshrl.u32 %v1606, 7
      %v1608 = vsub.s32 1, %v1607
      %v1609 = vrot.slane %v1518, %v1608
      %v1610 = vmul.f32 %v1605, %v1609
      %v1611 = vlaneseq
      %v1612 = vshrl.u32 %v1611, 7
      %v1613 = vsub.s32 2, %v1612
      %v1614 = vrot.slane %v1518, %v1613
      %v1615 = vadd.f32 %v1610, %v1614
      %v1616 = vmax.f32 %v1615, 0.0
      %v1617 = vadd.f32 %v1616, %v1499
      %v1618 = vld [vmem:[%s16] sm:$0xff]
      %v1619 = vld [vmem:[%s17] sm:$0xff]
      %v1620 = vld [vmem:[%s17 + $0x8] sm:$0xff]
      %v1621 = vld [vmem:[%s17 + $0x10] sm:$0xff]
      %1623 = vset.pattern.permute.xlu0 0
      %1624 = vperm.xlu0 %1623, %v1619
      %v1625 = vpop.permute.xlu0 %1624
      %vm1627 = vcmask 64512
      %v1629 = vsel %vm1627, %v1618, 0
      %1631 = vmatprep.subr.mxu0 0.0
      %1632 = vmatpush1.msra.mxu0 %v1617
      %1633 = vmatprep.subr.mxu0 0.0
      %1634 = vmatpush1.msra.mxu0 0.0
      %1635 = vmatprep.subr.mxu0 0.0
      %1636 = vmatpush1.msra.mxu0 0.0
      %1637 = vmatprep.subr.mxu0 0.0
      %1638 = vmatpush1.msra.mxu0 0.0
      %1639 = vmatprep.subr.mxu0 0.0
      %1640 = vmatpush1.msra.mxu0 0.0
      %1641 = vmatprep.subr.mxu0 0.0
      %1642 = vmatpush1.msra.mxu0 0.0
      %1643 = vmatprep.subr.mxu0 0.0
      %1644 = vmatpush1.msra.mxu0 0.0
      %1645 = vmatprep.subr.mxu0 0.0
      %1646 = vmatpush1.msra.mxu0 0.0
      %1647 = vmatprep.subr.mxu0 0.0
      %1648 = vmatpush1.msra.mxu0 0.0
      %1649 = vmatprep.subr.mxu0 0.0
      %1650 = vmatpush1.msra.mxu0 0.0
      %1651 = vmatprep.subr.mxu0 0.0
      %1652 = vmatpush1.msra.mxu0 0.0
      %1653 = vmatprep.subr.mxu0 0.0
      %1654 = vmatpush1.msra.mxu0 0.0
      %1655 = vmatprep.subr.mxu0 0.0
      %1656 = vmatpush1.msra.mxu0 0.0
      %1657 = vmatprep.subr.mxu0 0.0
      %1658 = vmatpush1.msra.mxu0 0.0
      %1659 = vmatprep.subr.mxu0 0.0
      %1660 = vmatpush1.msra.mxu0 0.0
      %1661 = vmatprep.subr.mxu0 0.0
      %1662 = vmatpush1.msra.mxu0 0.0
      %1663 = vmatprep.subr.mxu0 0.0
      %1664 = vmatpush1.msra.mxu0 0.0
      %1665 = vmatprep.subr.mxu0 0.0
      %1666 = vmatpush1.msra.mxu0 0.0
      %1667 = vmatprep.subr.mxu0 0.0
      %1668 = vmatpush1.msra.mxu0 0.0
      %1669 = vmatprep.subr.mxu0 0.0
      %1670 = vmatpush1.msra.mxu0 0.0
      %1671 = vmatprep.subr.mxu0 0.0
      %1672 = vmatpush1.msra.mxu0 0.0
      %1673 = vmatprep.subr.mxu0 0.0
      %1674 = vmatpush1.msra.mxu0 0.0
      %1675 = vmatprep.subr.mxu0 0.0
      %1676 = vmatpush1.msra.mxu0 0.0
      %1677 = vmatprep.subr.mxu0 0.0
      %1678 = vmatpush1.msra.mxu0 0.0
      %1679 = vmatprep.subr.mxu0 0.0
      %1680 = vmatpush1.msra.mxu0 0.0
      %1681 = vmatprep.subr.mxu0 0.0
      %1682 = vmatpush1.msra.mxu0 0.0
      %1683 = vmatprep.subr.mxu0 0.0
      %1684 = vmatpush1.msra.mxu0 0.0
      %1685 = vmatprep.subr.mxu0 0.0
      %1686 = vmatpush1.msra.mxu0 0.0
      %1687 = vmatprep.subr.mxu0 0.0
      %1688 = vmatpush1.msra.mxu0 0.0
      %1689 = vmatprep.subr.mxu0 0.0
      %1690 = vmatpush1.msra.mxu0 0.0
      %1691 = vmatprep.subr.mxu0 0.0
      %1692 = vmatpush1.msra.mxu0 0.0
      %1693 = vmatprep.subr.mxu0 0.0
      %1694 = vmatpush1.msra.mxu0 0.0
      %1695 = vmatprep.mubr.f32.mxu0 0.0
      %1696 = vmatmul.mubr.f32.gmra.mrb[0].mxu0 %v1629
      %v1697 = vpop.f32.mrb[0].mxu0
      %v1698 = vadd.f32 %v1625, %v1697
      %v1699 = vpop.f32.mrb[0].mxu0
      %1700 = vdwg.mxu0
      %v1701 = vrot.slane %v1698, 4
      %v1702 = vadd.f32 %v1698, %v1701
      %v1703 = vrot.slane %v1702, 2
      %v1704 = vadd.f32 %v1702, %v1703
      %v1705 = vrot.slane %v1704, 1
      %v1706 = vadd.f32 %v1704, %v1705
      %v1707 = vmul.f32 %v1706, 0.125
      %v1708 = vmul.f32 %v1698, %v1698
      %v1709 = vrot.slane %v1708, 4
      %v1710 = vadd.f32 %v1708, %v1709
      %v1711 = vrot.slane %v1710, 2
      %v1712 = vadd.f32 %v1710, %v1711
      %v1713 = vrot.slane %v1712, 1
      %v1714 = vadd.f32 %v1712, %v1713
      %v1715 = vmul.f32 %v1714, 0.125
      %v1716 = vsub.f32 %v1698, %v1707
      %v1717 = vmul.f32 %v1707, %v1707
      %v1718 = vsub.f32 %v1715, %v1717
      %v1719 = vadd.f32 %v1718, 1e-05
      %v1720 = vrsqrt.pop %v1719
      %v1721 = vmul.f32 %v1716, %v1720
      %1723 = vset.pattern.permute.xlu0 0
      %1724 = vperm.xlu0 %1723, %v1620
      %v1725 = vpop.permute.xlu0 %1724
      %v1727 = vmul.f32 %v1721, %v1725
      %1729 = vset.pattern.permute.xlu0 0
      %1730 = vperm.xlu0 %1729, %v1621
      %v1731 = vpop.permute.xlu0 %1730
      %v1733 = vadd.f32 %v1727, %v1731
      %v1734 = vmax.f32 %v1733, 0.0
      %v1735 = vadd.f32 %v1734, %v1617
      %s1736 = scalar_lea.vmem %s16, 8
      %v1737 = vld [vmem:[%s1736] sm:$0xff]
      %s1738 = scalar_lea.vmem %s17, 24
      %v1739 = vld [vmem:[%s1738] sm:$0xff]
      %v1740 = vld [vmem:[%s1738 + $0x8] sm:$0xff]
      %v1741 = vld [vmem:[%s1738 + $0x10] sm:$0xff]
      %1743 = vset.pattern.permute.xlu0 0
      %1744 = vperm.xlu0 %1743, %v1739
      %v1745 = vpop.permute.xlu0 %1744
      %v1748 = vsel %vm1627, %v1737, 0
      %1750 = vmatprep.subr.mxu0 0.0
      %1751 = vmatpush1.msra.mxu0 %v1735
      %1752 = vmatprep.subr.mxu0 0.0
      %1753 = vmatpush1.msra.mxu0 0.0
      %1754 = vmatprep.subr.mxu0 0.0
      %1755 = vmatpush1.msra.mxu0 0.0
      %1756 = vmatprep.subr.mxu0 0.0
      %1757 = vmatpush1.msra.mxu0 0.0
      %1758 = vmatprep.subr.mxu0 0.0
      %1759 = vmatpush1.msra.mxu0 0.0
      %1760 = vmatprep.subr.mxu0 0.0
      %1761 = vmatpush1.msra.mxu0 0.0
      %1762 = vmatprep.subr.mxu0 0.0
      %1763 = vmatpush1.msra.mxu0 0.0
      %1764 = vmatprep.subr.mxu0 0.0
      %1765 = vmatpush1.msra.mxu0 0.0
      %1766 = vmatprep.subr.mxu0 0.0
      %1767 = vmatpush1.msra.mxu0 0.0
      %1768 = vmatprep.subr.mxu0 0.0
      %1769 = vmatpush1.msra.mxu0 0.0
      %1770 = vmatprep.subr.mxu0 0.0
      %1771 = vmatpush1.msra.mxu0 0.0
      %1772 = vmatprep.subr.mxu0 0.0
      %1773 = vmatpush1.msra.mxu0 0.0
      %1774 = vmatprep.subr.mxu0 0.0
      %1775 = vmatpush1.msra.mxu0 0.0
      %1776 = vmatprep.subr.mxu0 0.0
      %1777 = vmatpush1.msra.mxu0 0.0
      %1778 = vmatprep.subr.mxu0 0.0
      %1779 = vmatpush1.msra.mxu0 0.0
      %1780 = vmatprep.subr.mxu0 0.0
      %1781 = vmatpush1.msra.mxu0 0.0
      %1782 = vmatprep.subr.mxu0 0.0
      %1783 = vmatpush1.msra.mxu0 0.0
      %1784 = vmatprep.subr.mxu0 0.0
      %1785 = vmatpush1.msra.mxu0 0.0
      %1786 = vmatprep.subr.mxu0 0.0
      %1787 = vmatpush1.msra.mxu0 0.0
      %1788 = vmatprep.subr.mxu0 0.0
      %1789 = vmatpush1.msra.mxu0 0.0
      %1790 = vmatprep.subr.mxu0 0.0
      %1791 = vmatpush1.msra.mxu0 0.0
      %1792 = vmatprep.subr.mxu0 0.0
      %1793 = vmatpush1.msra.mxu0 0.0
      %1794 = vmatprep.subr.mxu0 0.0
      %1795 = vmatpush1.msra.mxu0 0.0
      %1796 = vmatprep.subr.mxu0 0.0
      %1797 = vmatpush1.msra.mxu0 0.0
      %1798 = vmatprep.subr.mxu0 0.0
      %1799 = vmatpush1.msra.mxu0 0.0
      %1800 = vmatprep.subr.mxu0 0.0
      %1801 = vmatpush1.msra.mxu0 0.0
      %1802 = vmatprep.subr.mxu0 0.0
      %1803 = vmatpush1.msra.mxu0 0.0
      %1804 = vmatprep.subr.mxu0 0.0
      %1805 = vmatpush1.msra.mxu0 0.0
      %1806 = vmatprep.subr.mxu0 0.0
      %1807 = vmatpush1.msra.mxu0 0.0
      %1808 = vmatprep.subr.mxu0 0.0
      %1809 = vmatpush1.msra.mxu0 0.0
      %1810 = vmatprep.subr.mxu0 0.0
      %1811 = vmatpush1.msra.mxu0 0.0
      %1812 = vmatprep.subr.mxu0 0.0
      %1813 = vmatpush1.msra.mxu0 0.0
      %1814 = vmatprep.mubr.f32.mxu0 0.0
      %1815 = vmatmul.mubr.f32.gmra.mrb[0].mxu0 %v1748
      %v1816 = vpop.f32.mrb[0].mxu0
      %v1817 = vadd.f32 %v1745, %v1816
      %v1818 = vpop.f32.mrb[0].mxu0
      %1819 = vdwg.mxu0
      %v1820 = vrot.slane %v1817, 4
      %v1821 = vadd.f32 %v1817, %v1820
      %v1822 = vrot.slane %v1821, 2
      %v1823 = vadd.f32 %v1821, %v1822
      %v1824 = vrot.slane %v1823, 1
      %v1825 = vadd.f32 %v1823, %v1824
      %v1826 = vmul.f32 %v1825, 0.125
      %v1827 = vmul.f32 %v1817, %v1817
      %v1828 = vrot.slane %v1827, 4
      %v1829 = vadd.f32 %v1827, %v1828
      %v1830 = vrot.slane %v1829, 2
      %v1831 = vadd.f32 %v1829, %v1830
      %v1832 = vrot.slane %v1831, 1
      %v1833 = vadd.f32 %v1831, %v1832
      %v1834 = vmul.f32 %v1833, 0.125
      %v1835 = vsub.f32 %v1817, %v1826
      %v1836 = vmul.f32 %v1826, %v1826
      %v1837 = vsub.f32 %v1834, %v1836
      %v1838 = vadd.f32 %v1837, 1e-05
      %v1839 = vrsqrt.pop %v1838
      %v1840 = vmul.f32 %v1835, %v1839
      %1842 = vset.pattern.permute.xlu0 0
      %1843 = vperm.xlu0 %1842, %v1740
      %v1844 = vpop.permute.xlu0 %1843
      %v1846 = vmul.f32 %v1840, %v1844
      %1848 = vset.pattern.permute.xlu0 0
      %1849 = vperm.xlu0 %1848, %v1741
      %v1850 = vpop.permute.xlu0 %1849
      %v1852 = vadd.f32 %v1846, %v1850
      %v1853 = vmax.f32 %v1852, 0.0
      %v1854 = vadd.f32 %v1853, %v1735
      %v1855 = vld [vmem:[%s18] sm:$0xf]
      %v1856 = vld [vmem:[%s19] sm:$0xf]
      %1858 = vset.pattern.permute.xlu0 0
      %1859 = vperm.xlu0 %1858, %v1856
      %v1860 = vpop.permute.xlu0 %1859
      %v1863 = vsel %vm1627, %v1855, 0
      %1865 = vmatprep.subr.mxu0 0.0
      %1866 = vmatpush1.msra.mxu0 %v1854
      %1867 = vmatprep.subr.mxu0 0.0
      %1868 = vmatpush1.msra.mxu0 0.0
      %1869 = vmatprep.subr.mxu0 0.0
      %1870 = vmatpush1.msra.mxu0 0.0
      %1871 = vmatprep.subr.mxu0 0.0
      %1872 = vmatpush1.msra.mxu0 0.0
      %1873 = vmatprep.subr.mxu0 0.0
      %1874 = vmatpush1.msra.mxu0 0.0
      %1875 = vmatprep.subr.mxu0 0.0
      %1876 = vmatpush1.msra.mxu0 0.0
      %1877 = vmatprep.subr.mxu0 0.0
      %1878 = vmatpush1.msra.mxu0 0.0
      %1879 = vmatprep.subr.mxu0 0.0
      %1880 = vmatpush1.msra.mxu0 0.0
      %1881 = vmatprep.subr.mxu0 0.0
      %1882 = vmatpush1.msra.mxu0 0.0
      %1883 = vmatprep.subr.mxu0 0.0
      %1884 = vmatpush1.msra.mxu0 0.0
      %1885 = vmatprep.subr.mxu0 0.0
      %1886 = vmatpush1.msra.mxu0 0.0
      %1887 = vmatprep.subr.mxu0 0.0
      %1888 = vmatpush1.msra.mxu0 0.0
      %1889 = vmatprep.subr.mxu0 0.0
      %1890 = vmatpush1.msra.mxu0 0.0
      %1891 = vmatprep.subr.mxu0 0.0
      %1892 = vmatpush1.msra.mxu0 0.0
      %1893 = vmatprep.subr.mxu0 0.0
      %1894 = vmatpush1.msra.mxu0 0.0
      %1895 = vmatprep.subr.mxu0 0.0
      %1896 = vmatpush1.msra.mxu0 0.0
      %1897 = vmatprep.subr.mxu0 0.0
      %1898 = vmatpush1.msra.mxu0 0.0
      %1899 = vmatprep.subr.mxu0 0.0
      %1900 = vmatpush1.msra.mxu0 0.0
      %1901 = vmatprep.subr.mxu0 0.0
      %1902 = vmatpush1.msra.mxu0 0.0
      %1903 = vmatprep.subr.mxu0 0.0
      %1904 = vmatpush1.msra.mxu0 0.0
      %1905 = vmatprep.subr.mxu0 0.0
      %1906 = vmatpush1.msra.mxu0 0.0
      %1907 = vmatprep.subr.mxu0 0.0
      %1908 = vmatpush1.msra.mxu0 0.0
      %1909 = vmatprep.subr.mxu0 0.0
      %1910 = vmatpush1.msra.mxu0 0.0
      %1911 = vmatprep.subr.mxu0 0.0
      %1912 = vmatpush1.msra.mxu0 0.0
      %1913 = vmatprep.subr.mxu0 0.0
      %1914 = vmatpush1.msra.mxu0 0.0
      %1915 = vmatprep.subr.mxu0 0.0
      %1916 = vmatpush1.msra.mxu0 0.0
      %1917 = vmatprep.subr.mxu0 0.0
      %1918 = vmatpush1.msra.mxu0 0.0
      %1919 = vmatprep.subr.mxu0 0.0
      %1920 = vmatpush1.msra.mxu0 0.0
      %1921 = vmatprep.subr.mxu0 0.0
      %1922 = vmatpush1.msra.mxu0 0.0
      %1923 = vmatprep.subr.mxu0 0.0
      %1924 = vmatpush1.msra.mxu0 0.0
      %1925 = vmatprep.subr.mxu0 0.0
      %1926 = vmatpush1.msra.mxu0 0.0
      %1927 = vmatprep.subr.mxu0 0.0
      %1928 = vmatpush1.msra.mxu0 0.0
      %1929 = vmatprep.mubr.f32.mxu0 0.0
      %1930 = vmatmul.mubr.f32.gmra.mrb[0].mxu0 %v1863
      %v1931 = vpop.f32.mrb[0].mxu0
      %v1932 = vadd.f32 %v1860, %v1931
      %v1933 = vpop.f32.mrb[0].mxu0
      %1934 = vdwg.mxu0
      %v1935 = vld [vmem:[%s20] sm:$0x1]
      %v1937 = vlaneseq
      %v1938 = vshrl.u32 %v1937, 7
      %v1939 = vsub.s32 0, %v1938
      %v1940 = vrot.slane %v1935, %v1939
      %v1942 = vmul.f32 %v1932, %v1940
      %vm1943 = vcmask 1043456
      %v1944 = vsel %vm1943, %v1942, 0.0
      %1945 = vadd.xlane.f32.xlu0 %v1944
      %v1946 = vpop.xlane.xlu0 %1945
      %v1947 = vld [vmem:[#allocation2] sm:$0x1]
      %v1949 = vlaneseq
      %v1950 = vshrl.u32 %v1949, 7
      %v1951 = vsub.s32 0, %v1950
      %v1952 = vrot.slane %v1947, %v1951
      %v1954 = vadd.f32 %v1946, %v1952
      %vm1955 = vcmask 3072
      %1956 = vst.msk [vmem:[%s775] sm:$0xf] %vm1955, %v1954
      %p1957 = scmp.lt.s32.totalorder %s39, 1
      %s1958 = scalar_select %p1957, %s39, 1
      %p1959 = scmp.lt.s32.totalorder %s40, 3
      %s1960 = scalar_select %p1959, %s40, 3
      %s1961 = smul.addr %s1958, 4
      %s1962 = sadd.s32 %s1960, %s1961
      %s1963 = smul.addr %s1962, 4
      %s1964 = scalar_lea.vmem %s22, %s1963
      // Predicated region
      $region109: #{fedci_forward.1} parent=107 // pred_check
        %p1965 = pneg %p550
      $region110: #{fedci_forward.1} parent=107 // pred_check_branch
        %1967 = sbr.rel (%p1965) target = $region112
      $region111: #{fedci_forward.1} parent=107 // pred_region
        _
      $region112: #{fedci_forward.1} parent=107 // pred_fallthru
        _
    $region108: #{fedci_forward.1} parent=5 // pred_fallthru
      _
    %p1968 = scmp.le.s32.totalorder 2, %s30
    // Predicated region
    $region113: #{fedci_forward.1} parent=5 // pred_check
      %p1969 = pneg %p1968
    $region114: #{fedci_forward.1} parent=5 // pred_check_branch
      %1971 = sbr.rel (%p1969) target = $region116
    $region115: #{fedci_forward.1} parent=5 // pred_region
      %s1972 = ssub.s32 %s30, 2
      // Predicated region
      $region117: #{fedci_forward.1} parent=115 // pred_check
        %p1973 = pneg %p556
      $region118: #{fedci_forward.1} parent=115 // pred_check_branch
        %1975 = sbr.rel (%p1973) target = $region120
      $region119: #{fedci_forward.1} parent=115 // pred_region
        %p1976 = scmp.lt.s32.totalorder %s41, 1
        %s1977 = scalar_select %p1976, %s41, 1
        %p1978 = scmp.lt.s32.totalorder %s42, 3
        %s1979 = scalar_select %p1978, %s42, 3
        %s1980 = smul.addr %s1977, 4
        %s1981 = sadd.s32 %s1979, %s1980
        %s1982 = smul.addr %s1981, 4
        %s1983 = scalar_lea.vmem %s22, %s1982
      $region120: #{fedci_forward.1} parent=115 // pred_fallthru
        _
    $region116: #{fedci_forward.1} parent=5 // pred_fallthru
      _
  $region6: #{fedci_forward.1} parent=0 // loop_footer
    %s34 = sadd.s32 1, %s30
  $region7: #{fedci_forward.1} parent=0 // loop_footer_branch
    %29 = sbr.rel target = $region3
  $region8: #{fedci_forward.1} parent=0 // loop_exit
    _

</llo_original>
